<compile_context>
chip_gen: v5e
topology: v5e:2x2
jax: 0.10.0
libtpu: 0.0.40
codegen_flags: <defaults>
</compile_context>

<pallas_src>
import functools

import jax
import jax.numpy as jnp
from jax import lax
from jax.experimental import pallas as pl
from jax.experimental.pallas import tpu as pltpu


VMEM_LIMIT_BYTES = 64 * 1024 * 1024   # explicit scoped-VMEM budget (v5e default 16MB, v7x 32MB)


def _cparams(*dims):
    return pltpu.CompilerParams(dimension_semantics=dims,
                                vmem_limit_bytes=VMEM_LIMIT_BYTES)


# ---------------------------------------------------------------------------
# Tiling helper: largest `align`-multiple tile <= pref that divides dim,
# otherwise the full dim (always a legal Pallas block size).
# ---------------------------------------------------------------------------
def _tile(dim, pref, align):
    if dim <= pref:
        return dim
    t = (pref // align) * align
    while t >= align:
        if dim % t == 0:
            return t
        t -= align
    return dim


def _heads_per_block(num_heads, head_dim):
    """Heads per attention block so the block width is 128 lanes (or full H)."""
    hidden = num_heads * head_dim
    hpb = min(max(1, 128 // head_dim), num_heads) if head_dim < 128 else 1
    while num_heads % hpb:
        hpb -= 1
    if (hpb * head_dim) % 128 != 0 and hpb * head_dim != hidden:
        hpb = num_heads          # fallback: one block spanning all heads
    return hpb


# ---------------------------------------------------------------------------
# Embedding LayerNorm (rows tiled, weights resident).
# ---------------------------------------------------------------------------
def _ln_kernel(x_ref, g_ref, b_ref, o_ref, *, eps):
    x = x_ref[...].astype(jnp.float32)
    mu = jnp.mean(x, axis=-1, keepdims=True)
    xc = x - mu
    var = jnp.mean(xc * xc, axis=-1, keepdims=True)
    o_ref[...] = (xc * lax.rsqrt(var + eps) * g_ref[...] + b_ref[...]).astype(o_ref.dtype)


def pallas_layernorm(x, gamma, beta, eps=1e-12, tm=512):
    M, H = x.shape
    tm = _tile(M, tm, 8)
    return pl.pallas_call(
        functools.partial(_ln_kernel, eps=eps),
        out_shape=jax.ShapeDtypeStruct((M, H), jnp.bfloat16),
        grid=(M // tm,),
        in_specs=[
            pl.BlockSpec((tm, H), lambda i: (i, 0)),
            pl.BlockSpec((1, H), lambda i: (0, 0)),
            pl.BlockSpec((1, H), lambda i: (0, 0)),
        ],
        out_specs=pl.BlockSpec((tm, H), lambda i: (i, 0)),
        compiler_params=_cparams("parallel"),
    )(x, gamma.reshape(1, H), beta.reshape(1, H))


# ---------------------------------------------------------------------------
# Fused QKV projection + multi-head self-attention.
#   grid = (batch, head_block); head_block width = heads_per_blk * head_dim
#   (== 128 lanes at BERT-base).  The (S, 3H) QKV slab is computed once per
#   batch element (head_block == 0) into a VMEM scratch laid out head-block-
#   major, so every later read is a cheap leading-dim index and every output
#   store is a full lane-dense block handled by the BlockSpec DMA.
#   1/sqrt(head_dim) is already folded into the Q weights.
# ---------------------------------------------------------------------------
def _qkv_attn_kernel(x_ref, w_ref, b_ref, bias_ref, o_ref, qkv_ref,
                     *, head_dim, heads_per_blk):
    blk_w = heads_per_blk * head_dim
    hidden = x_ref.shape[-1]
    n_blk = qkv_ref.shape[0]
    hp = pl.program_id(1)

    # ---- fused QKV projection, once per batch element ----
    @pl.when(hp == 0)
    def _():
        x = x_ref[0]                                               # (S, H) bf16
        qkv = jnp.dot(x, w_ref[...], preferred_element_type=jnp.float32)
        qkv = (qkv + b_ref[...].astype(jnp.float32)).astype(qkv_ref.dtype)
        for p in range(n_blk):                                     # static scatter into
            c = p * blk_w                                          # head-block layout
            qkv_ref[p, :, 0 * blk_w:1 * blk_w] = qkv[:, c:c + blk_w]
            qkv_ref[p, :, 1 * blk_w:2 * blk_w] = qkv[:, hidden + c:hidden + c + blk_w]
            qkv_ref[p, :, 2 * blk_w:3 * blk_w] = qkv[:, 2 * hidden + c:2 * hidden + c + blk_w]

    # ---- attention for the heads of this block ----
    slab = qkv_ref[hp]                                             # (S, 3*blk_w) bf16
    bias = bias_ref[0].astype(jnp.float32)                         # (1, S) additive mask
    outs = []
    for j in range(heads_per_blk):
        q = slab[:, j * head_dim:(j + 1) * head_dim]
        k = slab[:, blk_w + j * head_dim:blk_w + (j + 1) * head_dim]
        v = slab[:, 2 * blk_w + j * head_dim:2 * blk_w + (j + 1) * head_dim]
        # contract on last dims of q and k -> no explicit k.T / XLU transpose
        s = lax.dot_general(q, k, (((1,), (1,)), ((), ())),
                            preferred_element_type=jnp.float32)
        s = s + bias
        m = jnp.max(s, axis=-1, keepdims=True)
        e = jnp.exp(s - m)
        r = pl.reciprocal(jnp.sum(e, axis=-1, keepdims=True), approx=True)
        p_att = (e * r).astype(v.dtype)
        outs.append(jnp.dot(p_att, v, preferred_element_type=jnp.float32))
    ctx = outs[0] if len(outs) == 1 else jnp.concatenate(outs, axis=-1)
    o_ref[0] = ctx.astype(o_ref.dtype)
    # TODO(synk): for very long sequences (S >= 1024) add query-row tiling so
    # the (S, S) score matrix does not dominate the VMEM working set.


def pallas_qkv_attention(x, w_qkv, b_qkv, bias, num_heads):
    """x:(B,S,H) bf16, w_qkv:(H,3H) bf16 (q pre-scaled), bias:(B,1,S) f32."""
    B, S, H = x.shape
    H3 = w_qkv.shape[1]
    head_dim = H // num_heads
    hpb = _heads_per_block(num_heads, head_dim)
    blk_w = hpb * head_dim
    n_blk = num_heads // hpb
    return pl.pallas_call(
        functools.partial(_qkv_attn_kernel, head_dim=head_dim, heads_per_blk=hpb),
        out_shape=jax.ShapeDtypeStruct((B, S, H), jnp.bfloat16),
        grid=(B, n_blk),
        in_specs=[
            pl.BlockSpec((1, S, H), lambda b, hp: (b, 0, 0)),
            pl.BlockSpec((H, H3), lambda b, hp: (0, 0)),      # resident weight
            pl.BlockSpec((1, H3), lambda b, hp: (0, 0)),
            pl.BlockSpec((1, 1, S), lambda b, hp: (b, 0, 0)),
        ],
        out_specs=pl.BlockSpec((1, S, blk_w), lambda b, hp: (b, 0, hp)),
        scratch_shapes=[pltpu.VMEM((n_blk, S, 3 * blk_w), jnp.bfloat16)],
        compiler_params=_cparams("parallel", "arbitrary"),
    )(x, w_qkv, b_qkv.reshape(1, H3), bias)


# ---------------------------------------------------------------------------
# Attention-output projection fused with bias + residual + LayerNorm.
# Weight is resident (constant index_map); only activation rows are streamed.
# ---------------------------------------------------------------------------
def _dense_res_ln_kernel(x_ref, w_ref, b_ref, r_ref, g_ref, be_ref, o_ref, *, eps):
    h = jnp.dot(x_ref[...], w_ref[...], preferred_element_type=jnp.float32)
    h = h + b_ref[...].astype(jnp.float32) + r_ref[...].astype(jnp.float32)
    mu = jnp.mean(h, axis=-1, keepdims=True)
    hc = h - mu
    var = jnp.mean(hc * hc, axis=-1, keepdims=True)
    out = hc * lax.rsqrt(var + eps) * g_ref[...].astype(jnp.float32) \
        + be_ref[...].astype(jnp.float32)
    o_ref[...] = out.astype(o_ref.dtype)


def pallas_dense_res_ln(x, w, b, residual, gamma, beta, eps=1e-12, tm=512):
    M, K = x.shape
    N = w.shape[1]
    tm = _tile(M, tm, 8)
    return pl.pallas_call(
        functools.partial(_dense_res_ln_kernel, eps=eps),
        out_shape=jax.ShapeDtypeStruct((M, N), jnp.bfloat16),
        grid=(M // tm,),
        in_specs=[
            pl.BlockSpec((tm, K), lambda i: (i, 0)),
            pl.BlockSpec((K, N), lambda i: (0, 0)),           # resident weight
            pl.BlockSpec((1, N), lambda i: (0, 0)),
            pl.BlockSpec((tm, N), lambda i: (i, 0)),
            pl.BlockSpec((1, N), lambda i: (0, 0)),
            pl.BlockSpec((1, N), lambda i: (0, 0)),
        ],
        out_specs=pl.BlockSpec((tm, N), lambda i: (i, 0)),
        compiler_params=_cparams("parallel"),
    )(x, w, b.reshape(1, N), residual, gamma.reshape(1, N), beta.reshape(1, N))


# ---------------------------------------------------------------------------
# Fully fused FFN: LayerNorm( gelu(x@Wi+bi) @ Wo + bo + x ).
# Both weights resident; the (tm, I) intermediate never leaves VMEM.
# ---------------------------------------------------------------------------
def _ffn_kernel(x_ref, wi_ref, bi_ref, wo_ref, bo_ref, g_ref, be_ref, o_ref, *, eps):
    x = x_ref[...]                                                 # (tm, H) bf16
    inter = jnp.dot(x, wi_ref[...], preferred_element_type=jnp.float32)
    inter = inter + bi_ref[...].astype(jnp.float32)
    # TODO(synk): HF BERT default is exact erf-GELU; tanh approximation used here.
    inter = jax.nn.gelu(inter, approximate=True).astype(x.dtype)   # stays in VMEM
    h = jnp.dot(inter, wo_ref[...], preferred_element_type=jnp.float32)
    h = h + bo_ref[...].astype(jnp.float32) + x.astype(jnp.float32)   # bias + residual
    mu = jnp.mean(h, axis=-1, keepdims=True)
    hc = h - mu
    var = jnp.mean(hc * hc, axis=-1, keepdims=True)
    out = hc * lax.rsqrt(var + eps) * g_ref[...].astype(jnp.float32) \
        + be_ref[...].astype(jnp.float32)
    o_ref[...] = out.astype(o_ref.dtype)


def pallas_ffn(x, wi, bi, wo, bo, gamma, beta, eps=1e-12, tm=256):
    M, H = x.shape
    I = wi.shape[1]
    tm = _tile(M, tm, 8)
    return pl.pallas_call(
        functools.partial(_ffn_kernel, eps=eps),
        out_shape=jax.ShapeDtypeStruct((M, H), jnp.bfloat16),
        grid=(M // tm,),
        in_specs=[
            pl.BlockSpec((tm, H), lambda i: (i, 0)),
            pl.BlockSpec((H, I), lambda i: (0, 0)),           # resident Wi
            pl.BlockSpec((1, I), lambda i: (0, 0)),
            pl.BlockSpec((I, H), lambda i: (0, 0)),           # resident Wo
            pl.BlockSpec((1, H), lambda i: (0, 0)),
            pl.BlockSpec((1, H), lambda i: (0, 0)),
            pl.BlockSpec((1, H), lambda i: (0, 0)),
        ],
        out_specs=pl.BlockSpec((tm, H), lambda i: (i, 0)),
        compiler_params=_cparams("parallel"),
    )(x, wi, bi.reshape(1, I), wo, bo.reshape(1, H),
      gamma.reshape(1, H), beta.reshape(1, H))


# ---------------------------------------------------------------------------
# Merged pooler + classifier (tiny: single whole-array kernel invocation).
#   logits = (tanh(cls @ Wp + bp)) @ Wf + bf
# ---------------------------------------------------------------------------
def _pool_cls_kernel(cls_ref, wp_ref, bp_ref, wf_ref, bf_ref, o_ref):
    pooled = jnp.tanh(
        jnp.dot(cls_ref[...], wp_ref[...], preferred_element_type=jnp.float32)
        + bp_ref[...])
    logits = jnp.dot(pooled.astype(wf_ref.dtype), wf_ref[...],
                     preferred_element_type=jnp.float32) + bf_ref[...]
    o_ref[...] = logits.astype(o_ref.dtype)


def pallas_pool_classifier(cls_tok, wp, bp, wf, bf):
    B, H = cls_tok.shape
    C = wf.shape[1]
    return pl.pallas_call(
        _pool_cls_kernel,
        out_shape=jax.ShapeDtypeStruct((B, C), jnp.float32),
    )(cls_tok, wp, bp.reshape(1, H), wf, bf.reshape(1, C))


# ---------------------------------------------------------------------------
# Parameter init (deterministic, synthetic) + forward glue
# ---------------------------------------------------------------------------
def init_params(key, cfg):
    H, I = cfg["hidden_size"], cfg["intermediate_size"]
    nH = cfg["num_heads"]
    d = H // nH
    inv_sqrt_d = 1.0 / float(d) ** 0.5

    def w_init(k, fan_in, fan_out):
        return 0.02 * jax.random.normal(k, (fan_in, fan_out), jnp.float32)

    keys = jax.random.split(key, 8 + cfg["num_layers"])
    p = {
        "word_emb": 0.02 * jax.random.normal(keys[0], (cfg["vocab_size"], H), jnp.float32),
        "pos_emb": 0.02 * jax.random.normal(keys[1], (cfg["max_position"], H), jnp.float32),
        "type_emb": 0.02 * jax.random.normal(keys[2], (cfg["type_vocab_size"], H), jnp.float32),
        "emb_ln_g": jnp.ones((H,), jnp.float32),
        "emb_ln_b": jnp.zeros((H,), jnp.float32),
        "pool_w": w_init(keys[3], H, H).astype(jnp.bfloat16),
        "pool_b": jnp.zeros((H,), jnp.float32),
        "fc_w": w_init(keys[4], H, cfg["num_classes"]).astype(jnp.bfloat16),
        "fc_b": jnp.zeros((cfg["num_classes"],), jnp.float32),
        "layers": [],
    }
    for l in range(cfg["num_layers"]):
        lk = jax.random.split(keys[8 + l], 6)
        # Fold the 1/sqrt(head_dim) attention scale into the Q projection
        # (a real checkpoint's q-bias must be pre-scaled the same way).
        w_q = w_init(lk[0], H, H) * inv_sqrt_d
        w_k = w_init(lk[1], H, H)
        w_v = w_init(lk[2], H, H)
        w_qkv = jnp.concatenate([w_q, w_k, w_v], axis=1).astype(jnp.bfloat16)
        b_qkv = jnp.zeros((3 * H,), jnp.float32)
        p["layers"].append({
            "w_qkv": w_qkv, "b_qkv": b_qkv,
            "wo": w_init(lk[3], H, H).astype(jnp.bfloat16), "bo": jnp.zeros((H,), jnp.float32),
            "ln1_g": jnp.ones((H,), jnp.float32), "ln1_b": jnp.zeros((H,), jnp.float32),
            "wi": w_init(lk[4], H, I).astype(jnp.bfloat16), "bi": jnp.zeros((I,), jnp.float32),
            "wo2": w_init(lk[5], I, H).astype(jnp.bfloat16), "bo2": jnp.zeros((H,), jnp.float32),
            "ln2_g": jnp.ones((H,), jnp.float32), "ln2_b": jnp.zeros((H,), jnp.float32),
        })
    return p


def cls_bert_forward(params, context, mask, cfg):
    """Mirrors ClsBertModel.forward: fc(BertModel(context, attention_mask=mask).pooler_output)."""
    B, S = context.shape
    H = cfg["hidden_size"]
    nH = cfg["num_heads"]

    # ---- embeddings (gathers are XLA glue; LN is a Pallas kernel) ----
    pos_ids = jnp.arange(S, dtype=jnp.int32)[None, :]
    emb = (params["word_emb"][context]
           + params["pos_emb"][pos_ids]
           + params["type_emb"][jnp.zeros_like(context)])
    hidden = pallas_layernorm(emb.reshape(B * S, H).astype(jnp.bfloat16),
                              params["emb_ln_g"], params["emb_ln_b"])     # (B*S, H) bf16
    # TODO(synk): dropout layers omitted (identity in eval mode).

    # extended attention mask: (1 - mask) * -10000, shared across heads
    bias = ((1.0 - mask.astype(jnp.float32)) * -10000.0)[:, None, :]      # (B, 1, S)

    # ---- transformer encoder ----
    for layer in params["layers"]:
        # fused QKV projection + attention (QKV slab stays in VMEM)
        ctx = pallas_qkv_attention(hidden.reshape(B, S, H),
                                   layer["w_qkv"], layer["b_qkv"], bias, nH)
        # attention-output projection fused with bias + residual + LayerNorm
        hidden = pallas_dense_res_ln(ctx.reshape(B * S, H), layer["wo"], layer["bo"],
                                     hidden, layer["ln1_g"], layer["ln1_b"])
        # fully fused FFN (intermediate never leaves VMEM)
        hidden = pallas_ffn(hidden, layer["wi"], layer["bi"], layer["wo2"],
                            layer["bo2"], layer["ln2_g"], layer["ln2_b"])

    # ---- pooler (tanh dense on [CLS]) + classifier, merged tiny kernel ----
    cls_tok = hidden.reshape(B, S, H)[:, 0, :]                            # (B, H) bf16
    logits = pallas_pool_classifier(cls_tok, params["pool_w"], params["pool_b"],
                                    params["fc_w"], params["fc_b"])       # (B, C) f32
    return logits


# ---------------------------------------------------------------------------
# Example run
# ---------------------------------------------------------------------------
if __name__ == "__main__":
    cfg = dict(
        vocab_size=50,
        hidden_size=32,
        num_layers=2,
        num_heads=2,
        intermediate_size=64,
        max_position=16,
        type_vocab_size=2,
        num_classes=3,
    )
    B, S = 2, 8

    params = init_params(jax.random.PRNGKey(0), cfg)

    context = jax.random.randint(jax.random.PRNGKey(1), (B, S), 0,
                                 cfg["vocab_size"], dtype=jnp.int32)
    seq_len = jnp.full((B,), S, dtype=jnp.int32)            # x[1] is unused in forward
    mask = jnp.ones((B, S), dtype=jnp.int32).at[:, -2:].set(0)

    # x mirrors the PyTorch input tuple: (context, seq_len, mask)
    x = (context, seq_len, mask)

    fwd = jax.jit(lambda c, m: cls_bert_forward(params, c, m, cfg))
    logits = fwd(x[0], x[2])
    jax.block_until_ready(logits)

    assert logits.shape == (B, cfg["num_classes"])
    assert logits.dtype == jnp.float32
    print("KERNEL_OK")
</pallas_src>

<mosaic_0001>
module attributes {stable_mosaic.version = 11 : i64} {
  func.func @_qkv_attn_kernel(%arg0: i32, %arg1: i32, %arg2: memref<1x8x32xbf16, #tpu.memory_space<vmem>>, %arg3: memref<32x96xbf16, #tpu.memory_space<vmem>>, %arg4: memref<1x96xf32, #tpu.memory_space<vmem>>, %arg5: memref<1x1x8xf32, #tpu.memory_space<vmem>>, %arg6: memref<1x8x32xbf16, #tpu.memory_space<vmem>>, %arg7: memref<1x8x96xbf16, #tpu.memory_space<vmem>>) attributes {dimension_semantics = [#tpu.dimension_semantics<parallel>, #tpu.dimension_semantics<arbitrary>], iteration_bounds = array<i64: 2, 1>, scalar_prefetch = 0 : i64, scratch_operands = 1 : i64, tpu.core_type = #tpu.core_type<tc>, window_params = [{transform_indices = @transform_0, window_bounds = array<i64: 1, 8, 32>}, {pipeline_mode = #tpu.pipeline_mode<synchronous>, transform_indices = @transform_1, window_bounds = array<i64: 32, 96>}, {pipeline_mode = #tpu.pipeline_mode<synchronous>, transform_indices = @transform_2, window_bounds = array<i64: 1, 96>}, {transform_indices = @transform_3, window_bounds = array<i64: 1, 1, 8>}, {transform_indices = @transform_4, window_bounds = array<i64: 1, 8, 32>}]} {
    %c0_i32 = arith.constant 0 : i32
    %0 = arith.cmpi eq, %arg1, %c0_i32 : i32
    %1 = arith.extui %0 : i1 to i32
    %c0_i32_0 = arith.constant 0 : i32
    %2 = arith.cmpi ne, %1, %c0_i32_0 : i32
    scf.if %2 {
      %c0_15 = arith.constant 0 : index
      %c0_16 = arith.constant 0 : index
      %c0_17 = arith.constant 0 : index
      %49 = vector.load %arg2[%c0_15, %c0_16, %c0_17] : memref<1x8x32xbf16, #tpu.memory_space<vmem>>, vector<1x8x32xbf16>
      %50 = vector.shape_cast %49 : vector<1x8x32xbf16> to vector<8x32xbf16>
      %c0_18 = arith.constant 0 : index
      %c0_19 = arith.constant 0 : index
      %51 = vector.load %arg3[%c0_18, %c0_19] : memref<32x96xbf16, #tpu.memory_space<vmem>>, vector<32x96xbf16>
      %cst_20 = arith.constant dense<0.000000e+00> : vector<8x96xf32>
      %52 = tpu.matmul %50, %51, %cst_20 {dimension_numbers = #tpu.dot_dimension_numbers<[1], [0], [0], [1], [0, 0, 1, 1], [], []>} : vector<8x32xbf16>, vector<32x96xbf16>, vector<8x96xf32> -> vector<8x96xf32>
      %c0_21 = arith.constant 0 : index
      %c0_22 = arith.constant 0 : index
      %53 = vector.load %arg4[%c0_21, %c0_22] : memref<1x96xf32, #tpu.memory_space<vmem>>, vector<1x96xf32>
      %54 = vector.broadcast %53 : vector<1x96xf32> to vector<8x96xf32>
      %55 = arith.addf %52, %54 : vector<8x96xf32>
      %56 = arith.truncf %55 : vector<8x96xf32> to vector<8x96xbf16>
      %57 = vector.extract_strided_slice %56 {offsets = [0, 0], sizes = [8, 32], strides = [1, 1]} : vector<8x96xbf16> to vector<8x32xbf16>
      %c0_23 = arith.constant 0 : index
      %c0_24 = arith.constant 0 : index
      %c0_25 = arith.constant 0 : index
      %58 = vector.load %arg7[%c0_23, %c0_24, %c0_25] : memref<1x8x96xbf16, #tpu.memory_space<vmem>>, vector<1x8x32xbf16>
      %59 = vector.shape_cast %58 : vector<1x8x32xbf16> to vector<8x32xbf16>
      %60 = vector.shape_cast %57 : vector<8x32xbf16> to vector<1x8x32xbf16>
      tpu.vector_store %arg7[%c0_23, %c0_24, %c0_25], %60 {strides = array<i32>} : memref<1x8x96xbf16, #tpu.memory_space<vmem>>, vector<1x8x32xbf16>,
      %61 = vector.extract_strided_slice %56 {offsets = [0, 32], sizes = [8, 32], strides = [1, 1]} : vector<8x96xbf16> to vector<8x32xbf16>
      %c0_26 = arith.constant 0 : index
      %c0_27 = arith.constant 0 : index
      %c32 = arith.constant 32 : index
      %62 = vector.load %arg7[%c0_26, %c0_27, %c32] : memref<1x8x96xbf16, #tpu.memory_space<vmem>>, vector<1x8x32xbf16>
      %63 = vector.shape_cast %62 : vector<1x8x32xbf16> to vector<8x32xbf16>
      %64 = vector.shape_cast %61 : vector<8x32xbf16> to vector<1x8x32xbf16>
      tpu.vector_store %arg7[%c0_26, %c0_27, %c32], %64 {strides = array<i32>} : memref<1x8x96xbf16, #tpu.memory_space<vmem>>, vector<1x8x32xbf16>,
      %65 = vector.extract_strided_slice %56 {offsets = [0, 64], sizes = [8, 32], strides = [1, 1]} : vector<8x96xbf16> to vector<8x32xbf16>
      %c0_28 = arith.constant 0 : index
      %c0_29 = arith.constant 0 : index
      %c64 = arith.constant 64 : index
      %66 = vector.load %arg7[%c0_28, %c0_29, %c64] : memref<1x8x96xbf16, #tpu.memory_space<vmem>>, vector<1x8x32xbf16>
      %67 = vector.shape_cast %66 : vector<1x8x32xbf16> to vector<8x32xbf16>
      %68 = vector.shape_cast %65 : vector<8x32xbf16> to vector<1x8x32xbf16>
      tpu.vector_store %arg7[%c0_28, %c0_29, %c64], %68 {strides = array<i32>} : memref<1x8x96xbf16, #tpu.memory_space<vmem>>, vector<1x8x32xbf16>,
    } else {
    }
    %3 = arith.index_cast %arg1 : i32 to index
    %c0 = arith.constant 0 : index
    %c0_1 = arith.constant 0 : index
    %4 = vector.load %arg7[%3, %c0, %c0_1] : memref<1x8x96xbf16, #tpu.memory_space<vmem>>, vector<1x8x96xbf16>
    %5 = vector.shape_cast %4 : vector<1x8x96xbf16> to vector<8x96xbf16>
    %c0_2 = arith.constant 0 : index
    %c0_3 = arith.constant 0 : index
    %c0_4 = arith.constant 0 : index
    %6 = vector.load %arg5[%c0_2, %c0_3, %c0_4] : memref<1x1x8xf32, #tpu.memory_space<vmem>>, vector<1x1x8xf32>
    %7 = vector.shape_cast %6 : vector<1x1x8xf32> to vector<1x8xf32>
    %8 = vector.extract_strided_slice %5 {offsets = [0, 0], sizes = [8, 16], strides = [1, 1]} : vector<8x96xbf16> to vector<8x16xbf16>
    %9 = vector.extract_strided_slice %5 {offsets = [0, 32], sizes = [8, 16], strides = [1, 1]} : vector<8x96xbf16> to vector<8x16xbf16>
    %10 = vector.extract_strided_slice %5 {offsets = [0, 64], sizes = [8, 16], strides = [1, 1]} : vector<8x96xbf16> to vector<8x16xbf16>
    %cst = arith.constant dense<0.000000e+00> : vector<8x8xf32>
    %11 = tpu.matmul %8, %9, %cst {dimension_numbers = #tpu.dot_dimension_numbers<[1], [1], [0], [0], [0, 0, 1, 0], [], []>} : vector<8x16xbf16>, vector<8x16xbf16>, vector<8x8xf32> -> vector<8x8xf32>
    %12 = vector.broadcast %7 : vector<1x8xf32> to vector<8x8xf32>
    %13 = arith.addf %11, %12 : vector<8x8xf32>
    %cst_5 = arith.constant dense<0xFF800000> : vector<8xf32>
    %14 = vector.multi_reduction <maximumf>, %13, %cst_5 [1] : vector<8x8xf32> to vector<8xf32>
    %15 = vector.shape_cast %14 : vector<8xf32> to vector<8x1xf32>
    %16 = vector.broadcast %15 : vector<8x1xf32> to vector<8x8xf32>
    %17 = arith.subf %13, %16 : vector<8x8xf32>
    %18 = math.exp %17 : vector<8x8xf32>
    %cst_6 = arith.constant dense<0.000000e+00> : vector<8xf32>
    %19 = vector.multi_reduction <add>, %18, %cst_6 [1] : vector<8x8xf32> to vector<8xf32>
    %20 = vector.shape_cast %19 : vector<8xf32> to vector<8x1xf32>
    %21 = tpu.reciprocal %20 {approx = true} : vector<8x1xf32> -> vector<8x1xf32>
    %22 = vector.broadcast %21 : vector<8x1xf32> to vector<8x8xf32>
    %23 = arith.mulf %18, %22 : vector<8x8xf32>
    %24 = arith.truncf %23 : vector<8x8xf32> to vector<8x8xbf16>
    %cst_7 = arith.constant dense<0.000000e+00> : vector<8x16xf32>
    %25 = tpu.matmul %24, %10, %cst_7 {dimension_numbers = #tpu.dot_dimension_numbers<[1], [0], [0], [1], [0, 0, 1, 1], [], []>} : vector<8x8xbf16>, vector<8x16xbf16>, vector<8x16xf32> -> vector<8x16xf32>
    %26 = vector.extract_strided_slice %5 {offsets = [0, 16], sizes = [8, 16], strides = [1, 1]} : vector<8x96xbf16> to vector<8x16xbf16>
    %27 = vector.extract_strided_slice %5 {offsets = [0, 48], sizes = [8, 16], strides = [1, 1]} : vector<8x96xbf16> to vector<8x16xbf16>
    %28 = vector.extract_strided_slice %5 {offsets = [0, 80], sizes = [8, 16], strides = [1, 1]} : vector<8x96xbf16> to vector<8x16xbf16>
    %cst_8 = arith.constant dense<0.000000e+00> : vector<8x8xf32>
    %29 = tpu.matmul %26, %27, %cst_8 {dimension_numbers = #tpu.dot_dimension_numbers<[1], [1], [0], [0], [0, 0, 1, 0], [], []>} : vector<8x16xbf16>, vector<8x16xbf16>, vector<8x8xf32> -> vector<8x8xf32>
    %30 = vector.broadcast %7 : vector<1x8xf32> to vector<8x8xf32>
    %31 = arith.addf %29, %30 : vector<8x8xf32>
    %cst_9 = arith.constant dense<0xFF800000> : vector<8xf32>
    %32 = vector.multi_reduction <maximumf>, %31, %cst_9 [1] : vector<8x8xf32> to vector<8xf32>
    %33 = vector.shape_cast %32 : vector<8xf32> to vector<8x1xf32>
    %34 = vector.broadcast %33 : vector<8x1xf32> to vector<8x8xf32>
    %35 = arith.subf %31, %34 : vector<8x8xf32>
    %36 = math.exp %35 : vector<8x8xf32>
    %cst_10 = arith.constant dense<0.000000e+00> : vector<8xf32>
    %37 = vector.multi_reduction <add>, %36, %cst_10 [1] : vector<8x8xf32> to vector<8xf32>
    %38 = vector.shape_cast %37 : vector<8xf32> to vector<8x1xf32>
    %39 = tpu.reciprocal %38 {approx = true} : vector<8x1xf32> -> vector<8x1xf32>
    %40 = vector.broadcast %39 : vector<8x1xf32> to vector<8x8xf32>
    %41 = arith.mulf %36, %40 : vector<8x8xf32>
    %42 = arith.truncf %41 : vector<8x8xf32> to vector<8x8xbf16>
    %cst_11 = arith.constant dense<0.000000e+00> : vector<8x16xf32>
    %43 = tpu.matmul %42, %28, %cst_11 {dimension_numbers = #tpu.dot_dimension_numbers<[1], [0], [0], [1], [0, 0, 1, 1], [], []>} : vector<8x8xbf16>, vector<8x16xbf16>, vector<8x16xf32> -> vector<8x16xf32>
    %44 = tpu.concatenate %25, %43 in 1 : vector<8x16xf32>, vector<8x16xf32> -> vector<8x32xf32>
    %45 = arith.truncf %44 : vector<8x32xf32> to vector<8x32xbf16>
    %c0_12 = arith.constant 0 : index
    %c0_13 = arith.constant 0 : index
    %c0_14 = arith.constant 0 : index
    %46 = vector.load %arg6[%c0_12, %c0_13, %c0_14] : memref<1x8x32xbf16, #tpu.memory_space<vmem>>, vector<1x8x32xbf16>
    %47 = vector.shape_cast %46 : vector<1x8x32xbf16> to vector<8x32xbf16>
    %48 = vector.shape_cast %45 : vector<8x32xbf16> to vector<1x8x32xbf16>
    tpu.vector_store %arg6[%c0_12, %c0_13, %c0_14], %48 {strides = array<i32>} : memref<1x8x32xbf16, #tpu.memory_space<vmem>>, vector<1x8x32xbf16>,
    return
  }
  func.func @transform_0(%arg0: i32, %arg1: i32) -> (i32, i32, i32) {
    %c0_i32 = arith.constant 0 : i32
    %c0_i32_0 = arith.constant 0 : i32
    %c0_i32_1 = arith.constant 0 : i32
    return %arg0, %c0_i32, %c0_i32_0 : i32, i32, i32
  }
  func.func @transform_1(%arg0: i32, %arg1: i32) -> (i32, i32) {
    %c0_i32 = arith.constant 0 : i32
    %c0_i32_0 = arith.constant 0 : i32
    %c0_i32_1 = arith.constant 0 : i32
    return %c0_i32, %c0_i32_0 : i32, i32
  }
  func.func @transform_2(%arg0: i32, %arg1: i32) -> (i32, i32) {
    %c0_i32 = arith.constant 0 : i32
    %c0_i32_0 = arith.constant 0 : i32
    %c0_i32_1 = arith.constant 0 : i32
    return %c0_i32, %c0_i32_0 : i32, i32
  }
  func.func @transform_3(%arg0: i32, %arg1: i32) -> (i32, i32, i32) {
    %c0_i32 = arith.constant 0 : i32
    %c0_i32_0 = arith.constant 0 : i32
    %c0_i32_1 = arith.constant 0 : i32
    return %arg0, %c0_i32, %c0_i32_0 : i32, i32, i32
  }
  func.func @transform_4(%arg0: i32, %arg1: i32) -> (i32, i32, i32) {
    %c0_i32 = arith.constant 0 : i32
    %c0_i32_0 = arith.constant 0 : i32
    return %arg0, %c0_i32, %arg1 : i32, i32, i32
  }
}

module attributes {stable_mosaic.version = 11 : i64} {
  func.func @_ln_kernel(%arg0: i32, %arg1: memref<16x32xbf16, #tpu.memory_space<vmem>>, %arg2: memref<1x32xf32, #tpu.memory_space<vmem>>, %arg3: memref<1x32xf32, #tpu.memory_space<vmem>>, %arg4: memref<16x32xbf16, #tpu.memory_space<vmem>>) attributes {dimension_semantics = [#tpu.dimension_semantics<parallel>], iteration_bounds = array<i64: 1>, scalar_prefetch = 0 : i64, scratch_operands = 0 : i64, tpu.core_type = #tpu.core_type<tc>, window_params = [{transform_indices = @transform_0, window_bounds = array<i64: 16, 32>}, {pipeline_mode = #tpu.pipeline_mode<synchronous>, transform_indices = @transform_1, window_bounds = array<i64: 1, 32>}, {pipeline_mode = #tpu.pipeline_mode<synchronous>, transform_indices = @transform_2, window_bounds = array<i64: 1, 32>}, {transform_indices = @transform_3, window_bounds = array<i64: 16, 32>}]} {
    %c0 = arith.constant 0 : index
    %c0_0 = arith.constant 0 : index
    %0 = vector.load %arg1[%c0, %c0_0] : memref<16x32xbf16, #tpu.memory_space<vmem>>, vector<16x32xbf16>
    %1 = arith.extf %0 : vector<16x32xbf16> to vector<16x32xf32>
    %cst = arith.constant dense<0.000000e+00> : vector<16xf32>
    %2 = vector.multi_reduction <add>, %1, %cst [1] : vector<16x32xf32> to vector<16xf32>
    %3 = vector.shape_cast %2 : vector<16xf32> to vector<16x1xf32>
    %cst_1 = arith.constant 3.200000e+01 : f32
    %4 = vector.broadcast %cst_1 : f32 to vector<16x1xf32>
    %5 = arith.divf %3, %4 : vector<16x1xf32>
    %6 = vector.broadcast %5 : vector<16x1xf32> to vector<16x32xf32>
    %7 = arith.subf %1, %6 : vector<16x32xf32>
    %8 = arith.mulf %7, %7 : vector<16x32xf32>
    %cst_2 = arith.constant dense<0.000000e+00> : vector<16xf32>
    %9 = vector.multi_reduction <add>, %8, %cst_2 [1] : vector<16x32xf32> to vector<16xf32>
    %10 = vector.shape_cast %9 : vector<16xf32> to vector<16x1xf32>
    %cst_3 = arith.constant 3.200000e+01 : f32
    %11 = vector.broadcast %cst_3 : f32 to vector<16x1xf32>
    %12 = arith.divf %10, %11 : vector<16x1xf32>
    %cst_4 = arith.constant 9.99999996E-13 : f32
    %13 = vector.broadcast %cst_4 : f32 to vector<16x1xf32>
    %14 = arith.addf %12, %13 : vector<16x1xf32>
    %15 = math.rsqrt %14 : vector<16x1xf32>
    %16 = vector.broadcast %15 : vector<16x1xf32> to vector<16x32xf32>
    %17 = arith.mulf %7, %16 : vector<16x32xf32>
    %c0_5 = arith.constant 0 : index
    %c0_6 = arith.constant 0 : index
    %18 = vector.load %arg2[%c0_5, %c0_6] : memref<1x32xf32, #tpu.memory_space<vmem>>, vector<1x32xf32>
    %19 = vector.broadcast %18 : vector<1x32xf32> to vector<16x32xf32>
    %20 = arith.mulf %17, %19 : vector<16x32xf32>
    %c0_7 = arith.constant 0 : index
    %c0_8 = arith.constant 0 : index
    %21 = vector.load %arg3[%c0_7, %c0_8] : memref<1x32xf32, #tpu.memory_space<vmem>>, vector<1x32xf32>
    %22 = vector.broadcast %21 : vector<1x32xf32> to vector<16x32xf32>
    %23 = arith.addf %20, %22 : vector<16x32xf32>
    %24 = arith.truncf %23 : vector<16x32xf32> to vector<16x32xbf16>
    %c0_9 = arith.constant 0 : index
    %c0_10 = arith.constant 0 : index
    %25 = vector.load %arg4[%c0_9, %c0_10] : memref<16x32xbf16, #tpu.memory_space<vmem>>, vector<16x32xbf16>
    tpu.vector_store %arg4[%c0_9, %c0_10], %24 {strides = array<i32>} : memref<16x32xbf16, #tpu.memory_space<vmem>>, vector<16x32xbf16>,
    return
  }
  func.func @transform_0(%arg0: i32) -> (i32, i32) {
    %c0_i32 = arith.constant 0 : i32
    %c0_i32_0 = arith.constant 0 : i32
    return %arg0, %c0_i32 : i32, i32
  }
  func.func @transform_1(%arg0: i32) -> (i32, i32) {
    %c0_i32 = arith.constant 0 : i32
    %c0_i32_0 = arith.constant 0 : i32
    %c0_i32_1 = arith.constant 0 : i32
    return %c0_i32, %c0_i32_0 : i32, i32
  }
  func.func @transform_2(%arg0: i32) -> (i32, i32) {
    %c0_i32 = arith.constant 0 : i32
    %c0_i32_0 = arith.constant 0 : i32
    %c0_i32_1 = arith.constant 0 : i32
    return %c0_i32, %c0_i32_0 : i32, i32
  }
  func.func @transform_3(%arg0: i32) -> (i32, i32) {
    %c0_i32 = arith.constant 0 : i32
    %c0_i32_0 = arith.constant 0 : i32
    return %arg0, %c0_i32 : i32, i32
  }
}

module attributes {stable_mosaic.version = 11 : i64} {
  func.func @_dense_res_ln_kernel(%arg0: i32, %arg1: memref<16x32xbf16, #tpu.memory_space<vmem>>, %arg2: memref<32x32xbf16, #tpu.memory_space<vmem>>, %arg3: memref<1x32xf32, #tpu.memory_space<vmem>>, %arg4: memref<16x32xbf16, #tpu.memory_space<vmem>>, %arg5: memref<1x32xf32, #tpu.memory_space<vmem>>, %arg6: memref<1x32xf32, #tpu.memory_space<vmem>>, %arg7: memref<16x32xbf16, #tpu.memory_space<vmem>>) attributes {dimension_semantics = [#tpu.dimension_semantics<parallel>], iteration_bounds = array<i64: 1>, scalar_prefetch = 0 : i64, scratch_operands = 0 : i64, tpu.core_type = #tpu.core_type<tc>, window_params = [{transform_indices = @transform_0, window_bounds = array<i64: 16, 32>}, {pipeline_mode = #tpu.pipeline_mode<synchronous>, transform_indices = @transform_1, window_bounds = array<i64: 32, 32>}, {pipeline_mode = #tpu.pipeline_mode<synchronous>, transform_indices = @transform_2, window_bounds = array<i64: 1, 32>}, {transform_indices = @transform_3, window_bounds = array<i64: 16, 32>}, {pipeline_mode = #tpu.pipeline_mode<synchronous>, transform_indices = @transform_4, window_bounds = array<i64: 1, 32>}, {pipeline_mode = #tpu.pipeline_mode<synchronous>, transform_indices = @transform_5, window_bounds = array<i64: 1, 32>}, {transform_indices = @transform_6, window_bounds = array<i64: 16, 32>}]} {
    %c0 = arith.constant 0 : index
    %c0_0 = arith.constant 0 : index
    %0 = vector.load %arg1[%c0, %c0_0] : memref<16x32xbf16, #tpu.memory_space<vmem>>, vector<16x32xbf16>
    %c0_1 = arith.constant 0 : index
    %c0_2 = arith.constant 0 : index
    %1 = vector.load %arg2[%c0_1, %c0_2] : memref<32x32xbf16, #tpu.memory_space<vmem>>, vector<32x32xbf16>
    %cst = arith.constant dense<0.000000e+00> : vector<16x32xf32>
    %2 = tpu.matmul %0, %1, %cst {dimension_numbers = #tpu.dot_dimension_numbers<[1], [0], [0], [1], [0, 0, 1, 1], [], []>} : vector<16x32xbf16>, vector<32x32xbf16>, vector<16x32xf32> -> vector<16x32xf32>
    %c0_3 = arith.constant 0 : index
    %c0_4 = arith.constant 0 : index
    %3 = vector.load %arg3[%c0_3, %c0_4] : memref<1x32xf32, #tpu.memory_space<vmem>>, vector<1x32xf32>
    %4 = vector.broadcast %3 : vector<1x32xf32> to vector<16x32xf32>
    %5 = arith.addf %2, %4 : vector<16x32xf32>
    %c0_5 = arith.constant 0 : index
    %c0_6 = arith.constant 0 : index
    %6 = vector.load %arg4[%c0_5, %c0_6] : memref<16x32xbf16, #tpu.memory_space<vmem>>, vector<16x32xbf16>
    %7 = arith.extf %6 : vector<16x32xbf16> to vector<16x32xf32>
    %8 = arith.addf %5, %7 : vector<16x32xf32>
    %cst_7 = arith.constant dense<0.000000e+00> : vector<16xf32>
    %9 = vector.multi_reduction <add>, %8, %cst_7 [1] : vector<16x32xf32> to vector<16xf32>
    %10 = vector.shape_cast %9 : vector<16xf32> to vector<16x1xf32>
    %cst_8 = arith.constant 3.200000e+01 : f32
    %11 = vector.broadcast %cst_8 : f32 to vector<16x1xf32>
    %12 = arith.divf %10, %11 : vector<16x1xf32>
    %13 = vector.broadcast %12 : vector<16x1xf32> to vector<16x32xf32>
    %14 = arith.subf %8, %13 : vector<16x32xf32>
    %15 = arith.mulf %14, %14 : vector<16x32xf32>
    %cst_9 = arith.constant dense<0.000000e+00> : vector<16xf32>
    %16 = vector.multi_reduction <add>, %15, %cst_9 [1] : vector<16x32xf32> to vector<16xf32>
    %17 = vector.shape_cast %16 : vector<16xf32> to vector<16x1xf32>
    %cst_10 = arith.constant 3.200000e+01 : f32
    %18 = vector.broadcast %cst_10 : f32 to vector<16x1xf32>
    %19 = arith.divf %17, %18 : vector<16x1xf32>
    %cst_11 = arith.constant 9.99999996E-13 : f32
    %20 = vector.broadcast %cst_11 : f32 to vector<16x1xf32>
    %21 = arith.addf %19, %20 : vector<16x1xf32>
    %22 = math.rsqrt %21 : vector<16x1xf32>
    %23 = vector.broadcast %22 : vector<16x1xf32> to vector<16x32xf32>
    %24 = arith.mulf %14, %23 : vector<16x32xf32>
    %c0_12 = arith.constant 0 : index
    %c0_13 = arith.constant 0 : index
    %25 = vector.load %arg5[%c0_12, %c0_13] : memref<1x32xf32, #tpu.memory_space<vmem>>, vector<1x32xf32>
    %26 = vector.broadcast %25 : vector<1x32xf32> to vector<16x32xf32>
    %27 = arith.mulf %24, %26 : vector<16x32xf32>
    %c0_14 = arith.constant 0 : index
    %c0_15 = arith.constant 0 : index
    %28 = vector.load %arg6[%c0_14, %c0_15] : memref<1x32xf32, #tpu.memory_space<vmem>>, vector<1x32xf32>
    %29 = vector.broadcast %28 : vector<1x32xf32> to vector<16x32xf32>
    %30 = arith.addf %27, %29 : vector<16x32xf32>
    %31 = arith.truncf %30 : vector<16x32xf32> to vector<16x32xbf16>
    %c0_16 = arith.constant 0 : index
    %c0_17 = arith.constant 0 : index
    %32 = vector.load %arg7[%c0_16, %c0_17] : memref<16x32xbf16, #tpu.memory_space<vmem>>, vector<16x32xbf16>
    tpu.vector_store %arg7[%c0_16, %c0_17], %31 {strides = array<i32>} : memref<16x32xbf16, #tpu.memory_space<vmem>>, vector<16x32xbf16>,
    return
  }
  func.func @transform_0(%arg0: i32) -> (i32, i32) {
    %c0_i32 = arith.constant 0 : i32
    %c0_i32_0 = arith.constant 0 : i32
    return %arg0, %c0_i32 : i32, i32
  }
  func.func @transform_1(%arg0: i32) -> (i32, i32) {
    %c0_i32 = arith.constant 0 : i32
    %c0_i32_0 = arith.constant 0 : i32
    %c0_i32_1 = arith.constant 0 : i32
    return %c0_i32, %c0_i32_0 : i32, i32
  }
  func.func @transform_2(%arg0: i32) -> (i32, i32) {
    %c0_i32 = arith.constant 0 : i32
    %c0_i32_0 = arith.constant 0 : i32
    %c0_i32_1 = arith.constant 0 : i32
    return %c0_i32, %c0_i32_0 : i32, i32
  }
  func.func @transform_3(%arg0: i32) -> (i32, i32) {
    %c0_i32 = arith.constant 0 : i32
    %c0_i32_0 = arith.constant 0 : i32
    return %arg0, %c0_i32 : i32, i32
  }
  func.func @transform_4(%arg0: i32) -> (i32, i32) {
    %c0_i32 = arith.constant 0 : i32
    %c0_i32_0 = arith.constant 0 : i32
    %c0_i32_1 = arith.constant 0 : i32
    return %c0_i32, %c0_i32_0 : i32, i32
  }
  func.func @transform_5(%arg0: i32) -> (i32, i32) {
    %c0_i32 = arith.constant 0 : i32
    %c0_i32_0 = arith.constant 0 : i32
    %c0_i32_1 = arith.constant 0 : i32
    return %c0_i32, %c0_i32_0 : i32, i32
  }
  func.func @transform_6(%arg0: i32) -> (i32, i32) {
    %c0_i32 = arith.constant 0 : i32
    %c0_i32_0 = arith.constant 0 : i32
    return %arg0, %c0_i32 : i32, i32
  }
}

module attributes {stable_mosaic.version = 11 : i64} {
  func.func @_ffn_kernel(%arg0: i32, %arg1: memref<16x32xbf16, #tpu.memory_space<vmem>>, %arg2: memref<32x64xbf16, #tpu.memory_space<vmem>>, %arg3: memref<1x64xf32, #tpu.memory_space<vmem>>, %arg4: memref<64x32xbf16, #tpu.memory_space<vmem>>, %arg5: memref<1x32xf32, #tpu.memory_space<vmem>>, %arg6: memref<1x32xf32, #tpu.memory_space<vmem>>, %arg7: memref<1x32xf32, #tpu.memory_space<vmem>>, %arg8: memref<16x32xbf16, #tpu.memory_space<vmem>>) attributes {dimension_semantics = [#tpu.dimension_semantics<parallel>], iteration_bounds = array<i64: 1>, scalar_prefetch = 0 : i64, scratch_operands = 0 : i64, tpu.core_type = #tpu.core_type<tc>, window_params = [{transform_indices = @transform_0, window_bounds = array<i64: 16, 32>}, {pipeline_mode = #tpu.pipeline_mode<synchronous>, transform_indices = @transform_1, window_bounds = array<i64: 32, 64>}, {pipeline_mode = #tpu.pipeline_mode<synchronous>, transform_indices = @transform_2, window_bounds = array<i64: 1, 64>}, {pipeline_mode = #tpu.pipeline_mode<synchronous>, transform_indices = @transform_3, window_bounds = array<i64: 64, 32>}, {pipeline_mode = #tpu.pipeline_mode<synchronous>, transform_indices = @transform_4, window_bounds = array<i64: 1, 32>}, {pipeline_mode = #tpu.pipeline_mode<synchronous>, transform_indices = @transform_5, window_bounds = array<i64: 1, 32>}, {pipeline_mode = #tpu.pipeline_mode<synchronous>, transform_indices = @transform_6, window_bounds = array<i64: 1, 32>}, {transform_indices = @transform_7, window_bounds = array<i64: 16, 32>}]} {
    %c0 = arith.constant 0 : index
    %c0_0 = arith.constant 0 : index
    %0 = vector.load %arg1[%c0, %c0_0] : memref<16x32xbf16, #tpu.memory_space<vmem>>, vector<16x32xbf16>
    %c0_1 = arith.constant 0 : index
    %c0_2 = arith.constant 0 : index
    %1 = vector.load %arg2[%c0_1, %c0_2] : memref<32x64xbf16, #tpu.memory_space<vmem>>, vector<32x64xbf16>
    %cst = arith.constant dense<0.000000e+00> : vector<16x64xf32>
    %2 = tpu.matmul %0, %1, %cst {dimension_numbers = #tpu.dot_dimension_numbers<[1], [0], [0], [1], [0, 0, 1, 1], [], []>} : vector<16x32xbf16>, vector<32x64xbf16>, vector<16x64xf32> -> vector<16x64xf32>
    %c0_3 = arith.constant 0 : index
    %c0_4 = arith.constant 0 : index
    %3 = vector.load %arg3[%c0_3, %c0_4] : memref<1x64xf32, #tpu.memory_space<vmem>>, vector<1x64xf32>
    %4 = vector.broadcast %3 : vector<1x64xf32> to vector<16x64xf32>
    %5 = arith.addf %2, %4 : vector<16x64xf32>
    %6 = arith.mulf %5, %5 : vector<16x64xf32>
    %7 = arith.mulf %5, %6 : vector<16x64xf32>
    %cst_5 = arith.constant 4.471500e-02 : f32
    %8 = vector.broadcast %cst_5 : f32 to vector<16x64xf32>
    %9 = arith.mulf %8, %7 : vector<16x64xf32>
    %10 = arith.addf %5, %9 : vector<16x64xf32>
    %cst_6 = arith.constant 0.797884583 : f32
    %11 = vector.broadcast %cst_6 : f32 to vector<16x64xf32>
    %12 = arith.mulf %11, %10 : vector<16x64xf32>
    %13 = math.tanh %12 : vector<16x64xf32>
    %cst_7 = arith.constant 1.000000e+00 : f32
    %14 = vector.broadcast %cst_7 : f32 to vector<16x64xf32>
    %15 = arith.addf %14, %13 : vector<16x64xf32>
    %cst_8 = arith.constant 5.000000e-01 : f32
    %16 = vector.broadcast %cst_8 : f32 to vector<16x64xf32>
    %17 = arith.mulf %16, %15 : vector<16x64xf32>
    %18 = arith.mulf %5, %17 : vector<16x64xf32>
    %19 = arith.truncf %18 : vector<16x64xf32> to vector<16x64xbf16>
    %c0_9 = arith.constant 0 : index
    %c0_10 = arith.constant 0 : index
    %20 = vector.load %arg4[%c0_9, %c0_10] : memref<64x32xbf16, #tpu.memory_space<vmem>>, vector<64x32xbf16>
    %cst_11 = arith.constant dense<0.000000e+00> : vector<16x32xf32>
    %21 = tpu.matmul %19, %20, %cst_11 {dimension_numbers = #tpu.dot_dimension_numbers<[1], [0], [0], [1], [0, 0, 1, 1], [], []>} : vector<16x64xbf16>, vector<64x32xbf16>, vector<16x32xf32> -> vector<16x32xf32>
    %c0_12 = arith.constant 0 : index
    %c0_13 = arith.constant 0 : index
    %22 = vector.load %arg5[%c0_12, %c0_13] : memref<1x32xf32, #tpu.memory_space<vmem>>, vector<1x32xf32>
    %23 = vector.broadcast %22 : vector<1x32xf32> to vector<16x32xf32>
    %24 = arith.addf %21, %23 : vector<16x32xf32>
    %25 = arith.extf %0 : vector<16x32xbf16> to vector<16x32xf32>
    %26 = arith.addf %24, %25 : vector<16x32xf32>
    %cst_14 = arith.constant dense<0.000000e+00> : vector<16xf32>
    %27 = vector.multi_reduction <add>, %26, %cst_14 [1] : vector<16x32xf32> to vector<16xf32>
    %28 = vector.shape_cast %27 : vector<16xf32> to vector<16x1xf32>
    %cst_15 = arith.constant 3.200000e+01 : f32
    %29 = vector.broadcast %cst_15 : f32 to vector<16x1xf32>
    %30 = arith.divf %28, %29 : vector<16x1xf32>
    %31 = vector.broadcast %30 : vector<16x1xf32> to vector<16x32xf32>
    %32 = arith.subf %26, %31 : vector<16x32xf32>
    %33 = arith.mulf %32, %32 : vector<16x32xf32>
    %cst_16 = arith.constant dense<0.000000e+00> : vector<16xf32>
    %34 = vector.multi_reduction <add>, %33, %cst_16 [1] : vector<16x32xf32> to vector<16xf32>
    %35 = vector.shape_cast %34 : vector<16xf32> to vector<16x1xf32>
    %cst_17 = arith.constant 3.200000e+01 : f32
    %36 = vector.broadcast %cst_17 : f32 to vector<16x1xf32>
    %37 = arith.divf %35, %36 : vector<16x1xf32>
    %cst_18 = arith.constant 9.99999996E-13 : f32
    %38 = vector.broadcast %cst_18 : f32 to vector<16x1xf32>
    %39 = arith.addf %37, %38 : vector<16x1xf32>
    %40 = math.rsqrt %39 : vector<16x1xf32>
    %41 = vector.broadcast %40 : vector<16x1xf32> to vector<16x32xf32>
    %42 = arith.mulf %32, %41 : vector<16x32xf32>
    %c0_19 = arith.constant 0 : index
    %c0_20 = arith.constant 0 : index
    %43 = vector.load %arg6[%c0_19, %c0_20] : memref<1x32xf32, #tpu.memory_space<vmem>>, vector<1x32xf32>
    %44 = vector.broadcast %43 : vector<1x32xf32> to vector<16x32xf32>
    %45 = arith.mulf %42, %44 : vector<16x32xf32>
    %c0_21 = arith.constant 0 : index
    %c0_22 = arith.constant 0 : index
    %46 = vector.load %arg7[%c0_21, %c0_22] : memref<1x32xf32, #tpu.memory_space<vmem>>, vector<1x32xf32>
    %47 = vector.broadcast %46 : vector<1x32xf32> to vector<16x32xf32>
    %48 = arith.addf %45, %47 : vector<16x32xf32>
    %49 = arith.truncf %48 : vector<16x32xf32> to vector<16x32xbf16>
    %c0_23 = arith.constant 0 : index
    %c0_24 = arith.constant 0 : index
    %50 = vector.load %arg8[%c0_23, %c0_24] : memref<16x32xbf16, #tpu.memory_space<vmem>>, vector<16x32xbf16>
    tpu.vector_store %arg8[%c0_23, %c0_24], %49 {strides = array<i32>} : memref<16x32xbf16, #tpu.memory_space<vmem>>, vector<16x32xbf16>,
    return
  }
  func.func @transform_0(%arg0: i32) -> (i32, i32) {
    %c0_i32 = arith.constant 0 : i32
    %c0_i32_0 = arith.constant 0 : i32
    return %arg0, %c0_i32 : i32, i32
  }
  func.func @transform_1(%arg0: i32) -> (i32, i32) {
    %c0_i32 = arith.constant 0 : i32
    %c0_i32_0 = arith.constant 0 : i32
    %c0_i32_1 = arith.constant 0 : i32
    return %c0_i32, %c0_i32_0 : i32, i32
  }
  func.func @transform_2(%arg0: i32) -> (i32, i32) {
    %c0_i32 = arith.constant 0 : i32
    %c0_i32_0 = arith.constant 0 : i32
    %c0_i32_1 = arith.constant 0 : i32
    return %c0_i32, %c0_i32_0 : i32, i32
  }
  func.func @transform_3(%arg0: i32) -> (i32, i32) {
    %c0_i32 = arith.constant 0 : i32
    %c0_i32_0 = arith.constant 0 : i32
    %c0_i32_1 = arith.constant 0 : i32
    return %c0_i32, %c0_i32_0 : i32, i32
  }
  func.func @transform_4(%arg0: i32) -> (i32, i32) {
    %c0_i32 = arith.constant 0 : i32
    %c0_i32_0 = arith.constant 0 : i32
    %c0_i32_1 = arith.constant 0 : i32
    return %c0_i32, %c0_i32_0 : i32, i32
  }
  func.func @transform_5(%arg0: i32) -> (i32, i32) {
    %c0_i32 = arith.constant 0 : i32
    %c0_i32_0 = arith.constant 0 : i32
    %c0_i32_1 = arith.constant 0 : i32
    return %c0_i32, %c0_i32_0 : i32, i32
  }
  func.func @transform_6(%arg0: i32) -> (i32, i32) {
    %c0_i32 = arith.constant 0 : i32
    %c0_i32_0 = arith.constant 0 : i32
    %c0_i32_1 = arith.constant 0 : i32
    return %c0_i32, %c0_i32_0 : i32, i32
  }
  func.func @transform_7(%arg0: i32) -> (i32, i32) {
    %c0_i32 = arith.constant 0 : i32
    %c0_i32_0 = arith.constant 0 : i32
    return %arg0, %c0_i32 : i32, i32
  }
}

module attributes {stable_mosaic.version = 11 : i64} {
  func.func @_pool_cls_kernel(%arg0: memref<2x32xbf16, #tpu.memory_space<vmem>>, %arg1: memref<32x32xbf16, #tpu.memory_space<vmem>>, %arg2: memref<1x32xf32, #tpu.memory_space<vmem>>, %arg3: memref<32x3xbf16, #tpu.memory_space<vmem>>, %arg4: memref<1x3xf32, #tpu.memory_space<vmem>>, %arg5: memref<2x3xf32, #tpu.memory_space<vmem>>) attributes {dimension_semantics = [], scalar_prefetch = 0 : i64, scratch_operands = 0 : i64, tpu.core_type = #tpu.core_type<tc>} {
    %c0 = arith.constant 0 : index
    %c0_0 = arith.constant 0 : index
    %0 = vector.load %arg0[%c0, %c0_0] : memref<2x32xbf16, #tpu.memory_space<vmem>>, vector<2x32xbf16>
    %c0_1 = arith.constant 0 : index
    %c0_2 = arith.constant 0 : index
    %1 = vector.load %arg1[%c0_1, %c0_2] : memref<32x32xbf16, #tpu.memory_space<vmem>>, vector<32x32xbf16>
    %cst = arith.constant dense<0.000000e+00> : vector<2x32xf32>
    %2 = tpu.matmul %0, %1, %cst {dimension_numbers = #tpu.dot_dimension_numbers<[1], [0], [0], [1], [0, 0, 1, 1], [], []>} : vector<2x32xbf16>, vector<32x32xbf16>, vector<2x32xf32> -> vector<2x32xf32>
    %c0_3 = arith.constant 0 : index
    %c0_4 = arith.constant 0 : index
    %3 = vector.load %arg2[%c0_3, %c0_4] : memref<1x32xf32, #tpu.memory_space<vmem>>, vector<1x32xf32>
    %4 = vector.broadcast %3 : vector<1x32xf32> to vector<2x32xf32>
    %5 = arith.addf %2, %4 : vector<2x32xf32>
    %6 = math.tanh %5 : vector<2x32xf32>
    %7 = arith.truncf %6 : vector<2x32xf32> to vector<2x32xbf16>
    %c0_5 = arith.constant 0 : index
    %c0_6 = arith.constant 0 : index
    %8 = vector.load %arg3[%c0_5, %c0_6] : memref<32x3xbf16, #tpu.memory_space<vmem>>, vector<32x3xbf16>
    %cst_7 = arith.constant dense<0.000000e+00> : vector<2x3xf32>
    %9 = tpu.matmul %7, %8, %cst_7 {dimension_numbers = #tpu.dot_dimension_numbers<[1], [0], [0], [1], [0, 0, 1, 1], [], []>} : vector<2x32xbf16>, vector<32x3xbf16>, vector<2x3xf32> -> vector<2x3xf32>
    %c0_8 = arith.constant 0 : index
    %c0_9 = arith.constant 0 : index
    %10 = vector.load %arg4[%c0_8, %c0_9] : memref<1x3xf32, #tpu.memory_space<vmem>>, vector<1x3xf32>
    %11 = vector.broadcast %10 : vector<1x3xf32> to vector<2x3xf32>
    %12 = arith.addf %9, %11 : vector<2x3xf32>
    %c0_10 = arith.constant 0 : index
    %c0_11 = arith.constant 0 : index
    %13 = vector.load %arg5[%c0_10, %c0_11] : memref<2x3xf32, #tpu.memory_space<vmem>>, vector<2x3xf32>
    tpu.vector_store %arg5[%c0_10, %c0_11], %12 {strides = array<i32>} : memref<2x3xf32, #tpu.memory_space<vmem>>, vector<2x3xf32>,
    return
  }
}

</mosaic_0001>

<llo_original>
// kernel: _lambda_.9
$region0: #{_lambda_.9}
  #allocation0 [shape = 'u32[]', space=smem, size = 0x4, offset = 0x4, fixed_abs, tag = 'smem constant byte address 0x4 - core index']
  #allocation1 [shape = 'u32[72,128]{1,0:T(1,128)}', space=vmem, size = 0x9000, scoped, tag = 'internal scratch']
  #allocation2 [shape = 'bf16[1,8,96]{2,1,0:T(8,128)(2,1)}', space=vmem, size = 0x800, scoped, tag = 'scratch operand']
  %s0 = inlined_call_operand.vmem [shape: bf16[2,8,32], index: 0, kind: input, shape index: {}]
  %s1 = inlined_call_operand.vmem [shape: bf16[32,96], index: 1, kind: input, shape index: {}]
  %s2 = inlined_call_operand.vmem [shape: f32[1,96], index: 2, kind: input, shape index: {}]
  %s3 = inlined_call_operand.vmem [shape: f32[2,1,8], index: 3, kind: input, shape index: {}]
  %s4 = inlined_call_operand.vmem [shape: bf16[2,8,32], index: 4, kind: output, shape index: {}]
  %s5 = sld [smem:[#allocation0]]
  $region53: #{_lambda_.9} parent=0
    _
  %s7 = ssub.s32 1, %s5
  %s8 = scalar_select 0, %s7, %s5
  loop: start=0, step=1, limit=4
  $region2: #{_lambda_.9} parent=0 // loop_pre_header
    _
  $region3: #{_lambda_.9} parent=0 // loop_header
    %s10 = sphi 0, %s14
    %p11 = scmp.ge.s32.totalorder %s10, 4
    %s17 = sphi 0, %s29
    %s18 = sphi 0, %s25
    %s19 = sphi 0, %s17
    %s20 = sphi 0, %s18
    %s21 = sphi 0, %s19
    %s22 = sphi 0, %s20
    %s32 = sphi 0, %s34
    %s35 = sphi 0, %s32
    %s36 = sphi 0, %s35
    %s52 = sphi 0, %s36
    %s56 = sphi 0, %s56
    %s58 = sphi 0, %s56
    %s59 = sphi 0, %s58
    %s73 = sphi 0, %s59
    %s77 = sphi 0, %s77
    %s79 = sphi 0, %s77
    %s80 = sphi 0, %s79
    %s94 = sphi 0, %s80
    %s100 = sphi 0, %s102
    %s103 = sphi 0, %s100
    %s104 = sphi 0, %s103
    %s120 = sphi 0, %s104
    %s128 = sphi 0, %s130
    %s131 = sphi 0, %s128
    %s132 = sphi 0, %s131
    %s148 = sphi 0, %s132
  $region4: #{_lambda_.9} parent=0 // loop_header_branch
    %13 = sbr.rel (%p11) target = $region8
  $region5: #{_lambda_.9} parent=0 // loop_body
    %s15 = ssub.s32 %s10, 1
    %s16 = ssub.s32 %s10, 2
    %s23 = sadd.s32 1, %s18
    %p24 = scmp.ge.s32.totalorder %s23, 1
    %s25 = scalar_select %p24, 0, %s23
    %s26 = sadd.s32 1, %s17
    %s27 = scalar_select %p24, %s26, %s17
    %p28 = scmp.ge.s32.totalorder %s27, 2
    %s29 = scalar_select %p28, 0, %s27
    %s30 = ssub.s32 %s17, %s29
    %p31 = scmp.eq.s32.totalorder %s30, 0
    %s33 = sadd.s32 %s32, 1
    %s34 = scalar_select %p31, %s32, %s33
    %p37 = pneg %p31
    %p38 = scmp.eq.s32.totalorder %s10, 1
    %p39 = por %p37, %p38
    %p40 = scmp.ne.s32.totalorder %s32, %s35
    %p41 = scmp.eq.s32.totalorder %s10, 0
    %p42 = por %p40, %p41
    %p43 = scmp.ne.s32.totalorder %s32, %s35
    %p44 = scmp.eq.s32.totalorder %s15, 1
    %p45 = por %p43, %p44
    %p46 = scmp.ne.s32.totalorder %s35, %s36
    %p47 = scmp.eq.s32.totalorder %s15, 0
    %p48 = por %p46, %p47
    %p49 = scmp.ne.s32.totalorder %s35, %s36
    %p50 = scmp.eq.s32.totalorder %s16, 1
    %p51 = por %p49, %p50
    %p53 = scmp.ne.s32.totalorder %s36, %s52
    %p54 = scmp.eq.s32.totalorder %s16, 0
    %p55 = por %p53, %p54
    %s57 = sadd.s32 %s56, 1
    %p60 = scmp.eq.s32.totalorder %s10, 1
    %p61 = scmp.ne.s32.totalorder %s56, %s58
    %p62 = scmp.eq.s32.totalorder %s10, 0
    %p63 = por %p61, %p62
    %p64 = scmp.ne.s32.totalorder %s56, %s58
    %p65 = scmp.eq.s32.totalorder %s15, 1
    %p66 = por %p64, %p65
    %p67 = scmp.ne.s32.totalorder %s58, %s59
    %p68 = scmp.eq.s32.totalorder %s15, 0
    %p69 = por %p67, %p68
    %p70 = scmp.ne.s32.totalorder %s58, %s59
    %p71 = scmp.eq.s32.totalorder %s16, 1
    %p72 = por %p70, %p71
    %p74 = scmp.ne.s32.totalorder %s59, %s73
    %p75 = scmp.eq.s32.totalorder %s16, 0
    %p76 = por %p74, %p75
    %s78 = sadd.s32 %s77, 1
    %p81 = scmp.eq.s32.totalorder %s10, 1
    %p82 = scmp.ne.s32.totalorder %s77, %s79
    %p83 = scmp.eq.s32.totalorder %s10, 0
    %p84 = por %p82, %p83
    %p85 = scmp.ne.s32.totalorder %s77, %s79
    %p86 = scmp.eq.s32.totalorder %s15, 1
    %p87 = por %p85, %p86
    %p88 = scmp.ne.s32.totalorder %s79, %s80
    %p89 = scmp.eq.s32.totalorder %s15, 0
    %p90 = por %p88, %p89
    %p91 = scmp.ne.s32.totalorder %s79, %s80
    %p92 = scmp.eq.s32.totalorder %s16, 1
    %p93 = por %p91, %p92
    %p95 = scmp.ne.s32.totalorder %s80, %s94
    %p96 = scmp.eq.s32.totalorder %s16, 0
    %p97 = por %p95, %p96
    %s98 = ssub.s32 %s17, %s29
    %p99 = scmp.eq.s32.totalorder %s98, 0
    %s101 = sadd.s32 %s100, 1
    %s102 = scalar_select %p99, %s100, %s101
    %p105 = pneg %p99
    %p106 = scmp.eq.s32.totalorder %s10, 1
    %p107 = por %p105, %p106
    %p108 = scmp.ne.s32.totalorder %s100, %s103
    %p109 = scmp.eq.s32.totalorder %s10, 0
    %p110 = por %p108, %p109
    %p111 = scmp.ne.s32.totalorder %s100, %s103
    %p112 = scmp.eq.s32.totalorder %s15, 1
    %p113 = por %p111, %p112
    %p114 = scmp.ne.s32.totalorder %s103, %s104
    %p115 = scmp.eq.s32.totalorder %s15, 0
    %p116 = por %p114, %p115
    %p117 = scmp.ne.s32.totalorder %s103, %s104
    %p118 = scmp.eq.s32.totalorder %s16, 1
    %p119 = por %p117, %p118
    %p121 = scmp.ne.s32.totalorder %s104, %s120
    %p122 = scmp.eq.s32.totalorder %s16, 0
    %p123 = por %p121, %p122
    %s124 = ssub.s32 %s17, %s29
    %s125 = ssub.s32 %s18, %s25
    %s126 = sor.u32 %s124, %s125
    %p127 = scmp.eq.s32.totalorder %s126, 0
    %s129 = sadd.s32 %s128, 1
    %s130 = scalar_select %p127, %s128, %s129
    %p133 = pneg %p127
    %p134 = scmp.eq.s32.totalorder %s10, 1
    %p135 = por %p133, %p134
    %p136 = scmp.ne.s32.totalorder %s128, %s131
    %p137 = scmp.eq.s32.totalorder %s10, 0
    %p138 = por %p136, %p137
    %p139 = scmp.ne.s32.totalorder %s128, %s131
    %p140 = scmp.eq.s32.totalorder %s15, 1
    %p141 = por %p139, %p140
    %p142 = scmp.ne.s32.totalorder %s131, %s132
    %p143 = scmp.eq.s32.totalorder %s15, 0
    %p144 = por %p142, %p143
    %p145 = scmp.ne.s32.totalorder %s131, %s132
    %p146 = scmp.eq.s32.totalorder %s16, 1
    %p147 = por %p145, %p146
    %p149 = scmp.ne.s32.totalorder %s132, %s148
    %p150 = scmp.eq.s32.totalorder %s16, 0
    %p151 = por %p149, %p150
    %p152 = scmp.le.s32.totalorder 1, %s10
    %p153 = scmp.lt.s32.totalorder %s10, 3
    %p154 = pnand %p152, %p153
    %p155 = pneg %p154
    // Predicated region
    $region9: #{_lambda_.9} parent=5 // pred_check
      _
    $region10: #{_lambda_.9} parent=5 // pred_check_branch
      %157 = sbr.rel (%p154) target = $region12
    $region11: #{_lambda_.9} parent=5 // pred_region
      %s158 = ssub.s32 %s10, 1
      // Predicated region
      $region13: #{_lambda_.9} parent=11 // pred_check
        %p159 = pneg %p69
      $region14: #{_lambda_.9} parent=11 // pred_check_branch
        %161 = sbr.rel (%p159) target = $region16
      $region15: #{_lambda_.9} parent=11 // pred_region
        _
      $region16: #{_lambda_.9} parent=11 // pred_fallthru
        _
      // Predicated region
      $region17: #{_lambda_.9} parent=11 // pred_check
        %p162 = pneg %p90
      $region18: #{_lambda_.9} parent=11 // pred_check_branch
        %164 = sbr.rel (%p162) target = $region20
      $region19: #{_lambda_.9} parent=11 // pred_region
        _
      $region20: #{_lambda_.9} parent=11 // pred_fallthru
        _
    $region12: #{_lambda_.9} parent=5 // pred_fallthru
      _
    %p165 = scmp.lt.s32.totalorder %s10, 2
    // Predicated region
    $region21: #{_lambda_.9} parent=5 // pred_check
      %p166 = pneg %p165
    $region22: #{_lambda_.9} parent=5 // pred_check_branch
      %168 = sbr.rel (%p166) target = $region24
    $region23: #{_lambda_.9} parent=5 // pred_region
      // Predicated region
      $region25: #{_lambda_.9} parent=23 // pred_check
        %p169 = pneg %p42
      $region26: #{_lambda_.9} parent=23 // pred_check_branch
        %171 = sbr.rel (%p169) target = $region28
      $region27: #{_lambda_.9} parent=23 // pred_region
        %p172 = scmp.lt.s32.totalorder %s17, 1
        %s173 = scalar_select %p172, %s17, 1
        %s174 = smul.addr %s173, 4
        %s175 = scalar_lea.vmem %s0, %s174
      $region28: #{_lambda_.9} parent=23 // pred_fallthru
        _
      // Predicated region
      $region29: #{_lambda_.9} parent=23 // pred_check
        %p176 = pneg %p110
      $region30: #{_lambda_.9} parent=23 // pred_check_branch
        %178 = sbr.rel (%p176) target = $region32
      $region31: #{_lambda_.9} parent=23 // pred_region
        %p179 = scmp.lt.s32.totalorder %s17, 1
        %s180 = scalar_select %p179, %s17, 1
        %s181 = scalar_lea.vmem %s3, %s180
      $region32: #{_lambda_.9} parent=23 // pred_fallthru
        _
    $region24: #{_lambda_.9} parent=5 // pred_fallthru
      _
    %p182 = scmp.le.s32.totalorder 1, %s10
    %p183 = scmp.lt.s32.totalorder %s10, 3
    %p184 = pnand %p182, %p183
    %p185 = pneg %p184
    // Predicated region
    $region33: #{_lambda_.9} parent=5 // pred_check
      _
    $region34: #{_lambda_.9} parent=5 // pred_check_branch
      %187 = sbr.rel (%p184) target = $region36
    $region35: #{_lambda_.9} parent=5 // pred_region
      %s188 = ssub.s32 %s10, 1
      %p189 = scmp.lt.s32.totalorder %s19, 1
      %s190 = scalar_select %p189, %s19, 1
      %s191 = smul.addr %s190, 4
      %s192 = scalar_lea.vmem %s0, %s191
      %p193 = pneg %p48
      %p194 = pneg %p45
      %p195 = pneg %p69
      %p196 = pneg %p66
      %p197 = pneg %p90
      %p198 = pneg %p87
      %p199 = scmp.lt.s32.totalorder %s19, 1
      %s200 = scalar_select %p199, %s19, 1
      %s201 = scalar_lea.vmem %s3, %s200
      %p202 = pneg %p116
      %p203 = pneg %p113
      %p204 = pneg %p144
      %p205 = pneg %p141
      %p206 = scmp.lt.s32.totalorder %s19, 1
      %s207 = scalar_select %p206, %s19, 1
      %p208 = scmp.lt.s32.totalorder %s20, 0
      %s209 = scalar_select %p208, %s20, 0
      %s210 = sadd.s32 %s209, %s207
      %s211 = smul.addr %s210, 4
      %s212 = scalar_lea.vmem %s4, %s211
      %p213 = scmp.lt.s32.totalorder %s19, 1
      %s214 = scalar_select %p213, %s19, 1
      %s215 = smul.addr %s214, 4
      %s216 = scalar_lea.vmem %s0, %s215
      %p217 = scmp.lt.s32.totalorder %s19, 1
      %s218 = scalar_select %p217, %s19, 1
      %s219 = scalar_lea.vmem %s3, %s218
      %p220 = scmp.lt.s32.totalorder %s19, 1
      %s221 = scalar_select %p220, %s19, 1
      %p222 = scmp.lt.s32.totalorder %s20, 0
      %s223 = scalar_select %p222, %s20, 0
      %s224 = sadd.s32 %s223, %s221
      %s225 = smul.addr %s224, 4
      %s226 = scalar_lea.vmem %s4, %s225
      %p228 = scmp.eq.s32.totalorder %s20, 0
      // Predicated region
      $region37: #{_lambda_.9} parent=35 // pred_check
        %p229 = pneg %p228
      $region38: #{_lambda_.9} parent=35 // pred_check_branch
        %231 = sbr.rel (%p229) target = $region40
      $region39: #{_lambda_.9} parent=35 // pred_region
        %v232 = vld [vmem:[%s216] sm:$0xf]
        %v233 = vld [vmem:[%s1] sm:$0xf]
        %v234 = vld [vmem:[%s1 + $0x4] sm:$0xf]
        %v235 = vld [vmem:[%s1 + $0x8] sm:$0xf]
        %v236 = vld [vmem:[%s1 + $0xc] sm:$0xf]
        %v237 = vld [vmem:[%s2] sm:$0x1]
        %v239 = vperm.slane %v237, 0
        %v245 = vunpack.c.l.b16 %v233
        %v246 = vunpack.c.l.b16 %v234
        %v247 = vunpack.c.l.b16 %v235
        %v248 = vunpack.c.l.b16 %v236
        %v249 = vpack.c.b16 %v246, %v245
        %v250 = vpack.c.b16 %v248, %v247
        %vm253 = vcmask 261120
        %v255 = vsel %vm253, %v232, 0
        %257 = vmatpush.bf16.msra.mxu0 0
        %258 = vmatpush.bf16.msra.mxu0 0
        %259 = vmatpush.bf16.msra.mxu0 0
        %260 = vmatpush.bf16.msra.mxu0 0
        %261 = vmatpush.bf16.msra.mxu0 0
        %262 = vmatpush.bf16.msra.mxu0 0
        %263 = vmatpush.bf16.msra.mxu0 %v250
        %264 = vmatpush.bf16.msra.mxu0 %v249
        %265 = vmatmul.bf16.gmra.mxu0 %v255
        %v266 = vpop.f32.mrf.mxu0
        %v267 = vadd.f32 %v239, %v266
        %v268 = vpop.f32.mrf.mxu0
        %269 = vdwg.mxu0
        %v270 = vpack.c.bf16 %v267, %v267
        %vm271 = vcmask 257024
        %272 = vst.msk [vmem:[#allocation2] sm:$0xf] %vm271, %v270
        %vm273 = vcmask 519424
        %274 = vst.msk [vmem:[#allocation2] sm:$0xf] %vm273, %v270
        %vm275 = vcmask 781824
        %276 = vst.msk [vmem:[#allocation2] sm:$0xf] %vm275, %v270
      $region40: #{_lambda_.9} parent=35 // pred_fallthru
        _
      %s277 = smul.addr %s20, 4
      %s278 = scalar_lea.vmem [#allocation2], %s277
      %v279 = vld [vmem:[%s278] sm:$0xf]
      %v280 = vld [vmem:[%s219] sm:$0x1]
      %v282 = vperm.slane %v280, 0
      %v285 = vunpack.c.l.b16 %v279
      %v286 = vpack.c.b16 %v285, %v285
      %287 = vrot.lane.b32.xlu0 %v286, 96
      %v288 = vpop.permute.xlu0 %287
      %vm289 = vcmask 130048
      %v291 = vsel %vm289, %v279, 0
      %v294 = vsel %vm289, %v288, 0
      %296 = vmatpush.bf16.xpose.msra.mxu0 0
      %297 = vmatpush.bf16.xpose.msra.mxu0 0
      %298 = vmatpush.bf16.xpose.msra.mxu0 0
      %299 = vmatpush.bf16.xpose.msra.mxu0 0
      %300 = vmatpush.bf16.xpose.msra.mxu0 0
      %301 = vmatpush.bf16.xpose.msra.mxu0 0
      %302 = vmatpush.bf16.xpose.msra.mxu0 0
      %303 = vmatpush.bf16.xpose.msra.mxu0 %v294
      %304 = vmatmul.bf16.gmra.mxu0 %v291
      %v305 = vpop.f32.mrf.mxu0
      %v306 = vadd.f32 %v282, %v305
      %v307 = vpop.f32.mrf.mxu0
      %308 = vdwg.mxu0
      %vm309 = vcmask 64512
      %v310 = vsel %vm309, %v306, -inf
      %311 = vmax.xlane.f32.xlu0 %v310
      %v312 = vpop.xlane.xlu0 %311
      %v313 = vsub.f32 %v306, %v312
      %v314 = vmul.f32 %v313, 1.442695
      %v315 = vpow.pop %v314
      %v316 = vsel %vm309, %v315, 0.0
      %317 = vadd.xlane.f32.xlu0 %v316
      %v318 = vpop.xlane.xlu0 %317
      %v319 = vrcp.pop %v318
      %v320 = vmul.f32 %v315, %v319
      %v321 = vpack.c.bf16 %v320, %v320
      %322 = vrot.lane.b32.xlu0 %v286, 64
      %v323 = vpop.permute.xlu0 %322
      %v325 = vsel %vm309, %v321, 0
      %vm327 = vcmask 1043456
      %v329 = vsel %vm327, %v323, 0
      %331 = vmatpush.bf16.msra.mxu0 0
      %332 = vmatpush.bf16.msra.mxu0 0
      %333 = vmatpush.bf16.msra.mxu0 0
      %334 = vmatpush.bf16.msra.mxu0 0
      %335 = vmatpush.bf16.msra.mxu0 0
      %336 = vmatpush.bf16.msra.mxu0 0
      %337 = vmatpush.bf16.msra.mxu0 0
      %338 = vmatpush.bf16.msra.mxu0 %v329
      %339 = vmatmul.bf16.gmra.mxu0 %v325
      %v340 = vpop.f32.mrf.mxu0
      %v341 = vadd.f32 0.0, %v340
      %v342 = vpop.f32.mrf.mxu0
      %343 = vdwg.mxu0
      %344 = vrot.lane.b32.xlu0 %v286, 112
      %v345 = vpop.permute.xlu0 %344
      %346 = vrot.lane.b32.xlu0 %v286, 80
      %v347 = vpop.permute.xlu0 %346
      %v349 = vsel %vm289, %v345, 0
      %v352 = vsel %vm289, %v347, 0
      %354 = vmatpush.bf16.xpose.msra.mxu0 0
      %355 = vmatpush.bf16.xpose.msra.mxu0 0
      %356 = vmatpush.bf16.xpose.msra.mxu0 0
      %357 = vmatpush.bf16.xpose.msra.mxu0 0
      %358 = vmatpush.bf16.xpose.msra.mxu0 0
      %359 = vmatpush.bf16.xpose.msra.mxu0 0
      %360 = vmatpush.bf16.xpose.msra.mxu0 0
      %361 = vmatpush.bf16.xpose.msra.mxu0 %v352
      %362 = vmatmul.bf16.gmra.mxu0 %v349
      %v363 = vpop.f32.mrf.mxu0
      %v364 = vadd.f32 %v282, %v363
      %v365 = vpop.f32.mrf.mxu0
      %366 = vdwg.mxu0
      %v367 = vsel %vm309, %v364, -inf
      %368 = vmax.xlane.f32.xlu0 %v367
      %v369 = vpop.xlane.xlu0 %368
      %v370 = vsub.f32 %v364, %v369
      %v371 = vmul.f32 %v370, 1.442695
      %v372 = vpow.pop %v371
      %v373 = vsel %vm309, %v372, 0.0
      %374 = vadd.xlane.f32.xlu0 %v373
      %v375 = vpop.xlane.xlu0 %374
      %v376 = vrcp.pop %v375
      %v377 = vmul.f32 %v372, %v376
      %v378 = vpack.c.bf16 %v377, %v377
      %379 = vrot.lane.b32.xlu0 %v286, 48
      %v380 = vpop.permute.xlu0 %379
      %v382 = vsel %vm309, %v378, 0
      %v385 = vsel %vm327, %v380, 0
      %387 = vmatpush.bf16.msra.mxu0 0
      %388 = vmatpush.bf16.msra.mxu0 0
      %389 = vmatpush.bf16.msra.mxu0 0
      %390 = vmatpush.bf16.msra.mxu0 0
      %391 = vmatpush.bf16.msra.mxu0 0
      %392 = vmatpush.bf16.msra.mxu0 0
      %393 = vmatpush.bf16.msra.mxu0 0
      %394 = vmatpush.bf16.msra.mxu0 %v385
      %395 = vmatmul.bf16.gmra.mxu0 %v382
      %v396 = vpop.f32.mrf.mxu0
      %v397 = vadd.f32 0.0, %v396
      %v398 = vpop.f32.mrf.mxu0
      %399 = vdwg.mxu0
      %401 = vrot.lane.b32.xlu0 %v397, 16
      %v402 = vpop.permute.xlu0 %401
      %v404 = vsel %vm289, %v341, %v402
      %v405 = vpack.c.bf16 %v404, %v404
      %vm406 = vcmask 257024
      %407 = vst.msk [vmem:[%s226] sm:$0xf] %vm406, %v405
      %p408 = scmp.lt.s32.totalorder %s19, 1
      %s409 = scalar_select %p408, %s19, 1
      %p410 = scmp.lt.s32.totalorder %s20, 0
      %s411 = scalar_select %p410, %s20, 0
      %s412 = sadd.s32 %s411, %s409
      %s413 = smul.addr %s412, 4
      %s414 = scalar_lea.vmem %s4, %s413
      // Predicated region
      $region41: #{_lambda_.9} parent=35 // pred_check
        %p415 = pneg %p141
      $region42: #{_lambda_.9} parent=35 // pred_check_branch
        %417 = sbr.rel (%p415) target = $region44
      $region43: #{_lambda_.9} parent=35 // pred_region
        _
      $region44: #{_lambda_.9} parent=35 // pred_fallthru
        _
    $region36: #{_lambda_.9} parent=5 // pred_fallthru
      _
    %p418 = scmp.le.s32.totalorder 2, %s10
    // Predicated region
    $region45: #{_lambda_.9} parent=5 // pred_check
      %p419 = pneg %p418
    $region46: #{_lambda_.9} parent=5 // pred_check_branch
      %421 = sbr.rel (%p419) target = $region48
    $region47: #{_lambda_.9} parent=5 // pred_region
      %s422 = ssub.s32 %s10, 2
      // Predicated region
      $region49: #{_lambda_.9} parent=47 // pred_check
        %p423 = pneg %p147
      $region50: #{_lambda_.9} parent=47 // pred_check_branch
        %425 = sbr.rel (%p423) target = $region52
      $region51: #{_lambda_.9} parent=47 // pred_region
        %p426 = scmp.lt.s32.totalorder %s21, 1
        %s427 = scalar_select %p426, %s21, 1
        %p428 = scmp.lt.s32.totalorder %s22, 0
        %s429 = scalar_select %p428, %s22, 0
        %s430 = sadd.s32 %s429, %s427
        %s431 = smul.addr %s430, 4
        %s432 = scalar_lea.vmem %s4, %s431
      $region52: #{_lambda_.9} parent=47 // pred_fallthru
        _
    $region48: #{_lambda_.9} parent=5 // pred_fallthru
      _
  $region6: #{_lambda_.9} parent=0 // loop_footer
    %s14 = sadd.s32 1, %s10
  $region7: #{_lambda_.9} parent=0 // loop_footer_branch
    %9 = sbr.rel target = $region3
  $region8: #{_lambda_.9} parent=0 // loop_exit
    _

// kernel: _lambda_.8
$region0: #{_lambda_.8}
  #allocation0 [shape = 'u32[]', space=smem, size = 0x4, offset = 0x4, fixed_abs, tag = 'smem constant byte address 0x4 - core index']
  #allocation1 [shape = 'u32[72,128]{1,0:T(1,128)}', space=vmem, size = 0x9000, scoped, tag = 'internal scratch']
  %s0 = inlined_call_operand.vmem [shape: bf16[16,32], index: 0, kind: input, shape index: {}]
  %s1 = inlined_call_operand.vmem [shape: f32[1,32], index: 1, kind: input, shape index: {}]
  %s2 = inlined_call_operand.vmem [shape: f32[1,32], index: 2, kind: input, shape index: {}]
  %s3 = inlined_call_operand.vmem [shape: bf16[16,32], index: 3, kind: output, shape index: {}]
  %s4 = sld [smem:[#allocation0]]
  $region22: #{_lambda_.8} parent=0
    _
  %s6 = ssub.s32 1, %s4
  %s7 = scalar_select 0, %s6, %s4
  // Predicated region
  $region2: #{_lambda_.8} parent=0 // pred_check
    _
  $region3: #{_lambda_.8} parent=0 // pred_check_branch
    %9 = sbr.rel (0) target = $region5
  $region4: #{_lambda_.8} parent=0 // pred_region
    _
  $region5: #{_lambda_.8} parent=0 // pred_fallthru
    _
  // Predicated region
  $region6: #{_lambda_.8} parent=0 // pred_check
    _
  $region7: #{_lambda_.8} parent=0 // pred_check_branch
    %11 = sbr.rel (0) target = $region9
  $region8: #{_lambda_.8} parent=0 // pred_region
    _
  $region9: #{_lambda_.8} parent=0 // pred_fallthru
    _
  // Predicated region
  $region10: #{_lambda_.8} parent=0 // pred_check
    _
  $region11: #{_lambda_.8} parent=0 // pred_check_branch
    %13 = sbr.rel (0) target = $region13
  $region12: #{_lambda_.8} parent=0 // pred_region
    _
  $region13: #{_lambda_.8} parent=0 // pred_fallthru
    _
  %v14 = vld [vmem:[%s0] sm:$0xf]
  %v15 = vld [vmem:[%s0 + $0x4] sm:$0xf]
  %v16 = vunpack.c.l.bf16 %v14
  %v17 = vunpack.c.l.bf16 %v15
  %vm18 = vcmask 261120
  %v19 = vsel %vm18, %v16, 0.0
  %20 = vadd.xlane.f32.xlu0 %v19
  %v21 = vpop.xlane.xlu0 %20
  %v22 = vsel %vm18, %v17, 0.0
  %23 = vadd.xlane.f32.xlu0 %v22
  %v24 = vpop.xlane.xlu0 %23
  %v25 = vrcp.pop 32.0
  %v26 = vmul.f32 32.0, %v25
  %v27 = vsub.f32 1.0, %v26
  %v28 = vmul.f32 %v25, %v27
  %v29 = vadd.f32 %v25, %v28
  %vm30 = vweird.f32 %v25
  %v31 = vsel %vm30, %v25, %v29
  %v32 = vmul.f32 %v21, %v31
  %v33 = vmul.f32 %v24, %v31
  %v34 = vsub.f32 %v16, %v32
  %v35 = vsub.f32 %v17, %v33
  %v36 = vmul.f32 %v34, %v34
  %v37 = vmul.f32 %v35, %v35
  %v38 = vsel %vm18, %v36, 0.0
  %39 = vadd.xlane.f32.xlu0 %v38
  %v40 = vpop.xlane.xlu0 %39
  %v41 = vsel %vm18, %v37, 0.0
  %42 = vadd.xlane.f32.xlu0 %v41
  %v43 = vpop.xlane.xlu0 %42
  %v44 = vmul.f32 %v40, %v31
  %v45 = vmul.f32 %v43, %v31
  %v46 = vadd.f32 %v44, 1e-12
  %v47 = vadd.f32 %v45, 1e-12
  %v48 = vrsqrt.pop %v46
  %v49 = vmul.f32 %v48, %v46
  %v50 = vmul.f32 %v49, %v48
  %v51 = vmul.f32 0.5, %v50
  %v52 = vsub.f32 1.5, %v51
  %v53 = vmul.f32 %v48, %v52
  %vm54 = vweird.f32 %v46
  %vm55 = vweird.f32 %v48
  %vm56 = vmor %vm54, %vm55
  %v57 = vsel %vm56, %v48, %v53
  %v58 = vrsqrt.pop %v47
  %v59 = vmul.f32 %v58, %v47
  %v60 = vmul.f32 %v59, %v58
  %v61 = vmul.f32 0.5, %v60
  %v62 = vsub.f32 1.5, %v61
  %v63 = vmul.f32 %v58, %v62
  %vm64 = vweird.f32 %v47
  %vm65 = vweird.f32 %v58
  %vm66 = vmor %vm64, %vm65
  %v67 = vsel %vm66, %v58, %v63
  %v68 = vmul.f32 %v34, %v57
  %v69 = vmul.f32 %v35, %v67
  %v70 = vld [vmem:[%s1] sm:$0x1]
  %v72 = vperm.slane %v70, 0
  %v74 = vmul.f32 %v68, %v72
  %v75 = vmul.f32 %v69, %v72
  %v76 = vld [vmem:[%s2] sm:$0x1]
  %v78 = vperm.slane %v76, 0
  %v80 = vadd.f32 %v74, %v78
  %v81 = vadd.f32 %v75, %v78
  %v82 = vpack.c.bf16 %v80, %v80
  %v83 = vpack.c.bf16 %v81, %v81
  %vm84 = vcmask 257024
  %85 = vst.msk [vmem:[%s3] sm:$0xf] %vm84, %v82
  %86 = vst.msk [vmem:[%s3 + $0x4] sm:$0xf] %vm84, %v83
  // Predicated region
  $region14: #{_lambda_.8} parent=0 // pred_check
    _
  $region15: #{_lambda_.8} parent=0 // pred_check_branch
    %88 = sbr.rel (0) target = $region17
  $region16: #{_lambda_.8} parent=0 // pred_region
    _
  $region17: #{_lambda_.8} parent=0 // pred_fallthru
    _
  // Predicated region
  $region18: #{_lambda_.8} parent=0 // pred_check
    _
  $region19: #{_lambda_.8} parent=0 // pred_check_branch
    %90 = sbr.rel (0) target = $region21
  $region20: #{_lambda_.8} parent=0 // pred_region
    _
  $region21: #{_lambda_.8} parent=0 // pred_fallthru
    _

// kernel: _lambda_.10
$region0: #{_lambda_.10}
  #allocation0 [shape = 'u32[]', space=smem, size = 0x4, offset = 0x4, fixed_abs, tag = 'smem constant byte address 0x4 - core index']
  #allocation1 [shape = 'u32[72,128]{1,0:T(1,128)}', space=vmem, size = 0x9000, scoped, tag = 'internal scratch']
  %s0 = inlined_call_operand.vmem [shape: bf16[16,32], index: 0, kind: input, shape index: {}]
  %s1 = inlined_call_operand.vmem [shape: bf16[32,32], index: 1, kind: input, shape index: {}]
  %s2 = inlined_call_operand.vmem [shape: f32[1,32], index: 2, kind: input, shape index: {}, may-alias: {2,5}]
  %s3 = inlined_call_operand.vmem [shape: bf16[16,32], index: 3, kind: input, shape index: {}]
  %s4 = inlined_call_operand.vmem [shape: f32[1,32], index: 4, kind: input, shape index: {}]
  %s5 = inlined_call_operand.vmem [shape: f32[1,32], index: 5, kind: input, shape index: {}, may-alias: {2,5}]
  %s6 = inlined_call_operand.vmem [shape: bf16[16,32], index: 6, kind: output, shape index: {}]
  %s7 = sld [smem:[#allocation0]]
  $region34: #{_lambda_.10} parent=0
    _
  %s9 = ssub.s32 1, %s7
  %s10 = scalar_select 0, %s9, %s7
  // Predicated region
  $region2: #{_lambda_.10} parent=0 // pred_check
    _
  $region3: #{_lambda_.10} parent=0 // pred_check_branch
    %12 = sbr.rel (0) target = $region5
  $region4: #{_lambda_.10} parent=0 // pred_region
    _
  $region5: #{_lambda_.10} parent=0 // pred_fallthru
    _
  // Predicated region
  $region6: #{_lambda_.10} parent=0 // pred_check
    _
  $region7: #{_lambda_.10} parent=0 // pred_check_branch
    %14 = sbr.rel (0) target = $region9
  $region8: #{_lambda_.10} parent=0 // pred_region
    _
  $region9: #{_lambda_.10} parent=0 // pred_fallthru
    _
  // Predicated region
  $region10: #{_lambda_.10} parent=0 // pred_check
    _
  $region11: #{_lambda_.10} parent=0 // pred_check_branch
    %16 = sbr.rel (0) target = $region13
  $region12: #{_lambda_.10} parent=0 // pred_region
    _
  $region13: #{_lambda_.10} parent=0 // pred_fallthru
    _
  // Predicated region
  $region14: #{_lambda_.10} parent=0 // pred_check
    _
  $region15: #{_lambda_.10} parent=0 // pred_check_branch
    %18 = sbr.rel (0) target = $region17
  $region16: #{_lambda_.10} parent=0 // pred_region
    _
  $region17: #{_lambda_.10} parent=0 // pred_fallthru
    _
  // Predicated region
  $region18: #{_lambda_.10} parent=0 // pred_check
    _
  $region19: #{_lambda_.10} parent=0 // pred_check_branch
    %20 = sbr.rel (0) target = $region21
  $region20: #{_lambda_.10} parent=0 // pred_region
    _
  $region21: #{_lambda_.10} parent=0 // pred_fallthru
    _
  // Predicated region
  $region22: #{_lambda_.10} parent=0 // pred_check
    _
  $region23: #{_lambda_.10} parent=0 // pred_check_branch
    %22 = sbr.rel (0) target = $region25
  $region24: #{_lambda_.10} parent=0 // pred_region
    _
  $region25: #{_lambda_.10} parent=0 // pred_fallthru
    _
  %v24 = vld [vmem:[%s0] sm:$0xf]
  %v25 = vld [vmem:[%s0 + $0x4] sm:$0xf]
  %v26 = vld [vmem:[%s1] sm:$0xf]
  %v27 = vld [vmem:[%s1 + $0x4] sm:$0xf]
  %v28 = vld [vmem:[%s1 + $0x8] sm:$0xf]
  %v29 = vld [vmem:[%s1 + $0xc] sm:$0xf]
  %v30 = vld [vmem:[%s2] sm:$0x1]
  %v32 = vperm.slane %v30, 0
  %v36 = vunpack.c.l.b16 %v24
  %v37 = vunpack.c.l.b16 %v25
  %v38 = vpack.c.b16 %v37, %v36
  %v43 = vunpack.c.l.b16 %v26
  %v44 = vunpack.c.l.b16 %v27
  %v45 = vunpack.c.l.b16 %v28
  %v46 = vunpack.c.l.b16 %v29
  %v47 = vpack.c.b16 %v44, %v43
  %v48 = vpack.c.b16 %v46, %v45
  %vm51 = vcmask 261120
  %v53 = vsel %vm51, %v38, 0
  %55 = vmatpush.bf16.msra.mxu0 0
  %56 = vmatpush.bf16.msra.mxu0 0
  %57 = vmatpush.bf16.msra.mxu0 0
  %58 = vmatpush.bf16.msra.mxu0 0
  %59 = vmatpush.bf16.msra.mxu0 0
  %60 = vmatpush.bf16.msra.mxu0 0
  %61 = vmatpush.bf16.msra.mxu0 %v48
  %62 = vmatpush.bf16.msra.mxu0 %v47
  %63 = vmatmul.bf16.gmra.mxu0 %v53
  %v64 = vpop.f32.mrf.mxu0
  %v65 = vadd.f32 %v32, %v64
  %v66 = vpop.f32.mrf.mxu0
  %v67 = vadd.f32 %v32, %v66
  %68 = vdwg.mxu0
  %v69 = vld [vmem:[%s3] sm:$0xf]
  %v70 = vld [vmem:[%s3 + $0x4] sm:$0xf]
  %v71 = vunpack.c.l.bf16 %v69
  %v72 = vunpack.c.l.bf16 %v70
  %v73 = vadd.f32 %v65, %v71
  %v74 = vadd.f32 %v67, %v72
  %v75 = vsel %vm51, %v73, 0.0
  %76 = vadd.xlane.f32.xlu0 %v75
  %v77 = vpop.xlane.xlu0 %76
  %v78 = vsel %vm51, %v74, 0.0
  %79 = vadd.xlane.f32.xlu0 %v78
  %v80 = vpop.xlane.xlu0 %79
  %v81 = vrcp.pop 32.0
  %v82 = vmul.f32 32.0, %v81
  %v83 = vsub.f32 1.0, %v82
  %v84 = vmul.f32 %v81, %v83
  %v85 = vadd.f32 %v81, %v84
  %vm86 = vweird.f32 %v81
  %v87 = vsel %vm86, %v81, %v85
  %v88 = vmul.f32 %v77, %v87
  %v89 = vmul.f32 %v80, %v87
  %v90 = vsub.f32 %v73, %v88
  %v91 = vsub.f32 %v74, %v89
  %v92 = vmul.f32 %v90, %v90
  %v93 = vmul.f32 %v91, %v91
  %v94 = vsel %vm51, %v92, 0.0
  %95 = vadd.xlane.f32.xlu0 %v94
  %v96 = vpop.xlane.xlu0 %95
  %v97 = vsel %vm51, %v93, 0.0
  %98 = vadd.xlane.f32.xlu0 %v97
  %v99 = vpop.xlane.xlu0 %98
  %v100 = vmul.f32 %v96, %v87
  %v101 = vmul.f32 %v99, %v87
  %v102 = vadd.f32 %v100, 1e-12
  %v103 = vadd.f32 %v101, 1e-12
  %v104 = vrsqrt.pop %v102
  %v105 = vmul.f32 %v104, %v102
  %v106 = vmul.f32 %v105, %v104
  %v107 = vmul.f32 0.5, %v106
  %v108 = vsub.f32 1.5, %v107
  %v109 = vmul.f32 %v104, %v108
  %vm110 = vweird.f32 %v102
  %vm111 = vweird.f32 %v104
  %vm112 = vmor %vm110, %vm111
  %v113 = vsel %vm112, %v104, %v109
  %v114 = vrsqrt.pop %v103
  %v115 = vmul.f32 %v114, %v103
  %v116 = vmul.f32 %v115, %v114
  %v117 = vmul.f32 0.5, %v116
  %v118 = vsub.f32 1.5, %v117
  %v119 = vmul.f32 %v114, %v118
  %vm120 = vweird.f32 %v103
  %vm121 = vweird.f32 %v114
  %vm122 = vmor %vm120, %vm121
  %v123 = vsel %vm122, %v114, %v119
  %v124 = vmul.f32 %v90, %v113
  %v125 = vmul.f32 %v91, %v123
  %v126 = vld [vmem:[%s4] sm:$0x1]
  %v128 = vperm.slane %v126, 0
  %v130 = vmul.f32 %v124, %v128
  %v131 = vmul.f32 %v125, %v128
  %v132 = vld [vmem:[%s5] sm:$0x1]
  %v134 = vperm.slane %v132, 0
  %v136 = vadd.f32 %v130, %v134
  %v137 = vadd.f32 %v131, %v134
  %v138 = vpack.c.bf16 %v136, %v136
  %v139 = vpack.c.bf16 %v137, %v137
  %vm140 = vcmask 257024
  %141 = vst.msk [vmem:[%s6] sm:$0xf] %vm140, %v138
  %142 = vst.msk [vmem:[%s6 + $0x4] sm:$0xf] %vm140, %v139
  // Predicated region
  $region26: #{_lambda_.10} parent=0 // pred_check
    _
  $region27: #{_lambda_.10} parent=0 // pred_check_branch
    %144 = sbr.rel (0) target = $region29
  $region28: #{_lambda_.10} parent=0 // pred_region
    _
  $region29: #{_lambda_.10} parent=0 // pred_fallthru
    _
  // Predicated region
  $region30: #{_lambda_.10} parent=0 // pred_check
    _
  $region31: #{_lambda_.10} parent=0 // pred_check_branch
    %146 = sbr.rel (0) target = $region33
  $region32: #{_lambda_.10} parent=0 // pred_region
    _
  $region33: #{_lambda_.10} parent=0 // pred_fallthru
    _

// kernel: _lambda_.11
$region0: #{_lambda_.11}
  #allocation0 [shape = 'u32[]', space=smem, size = 0x4, offset = 0x4, fixed_abs, tag = 'smem constant byte address 0x4 - core index']
  #allocation1 [shape = 'u32[72,128]{1,0:T(1,128)}', space=vmem, size = 0x9000, scoped, tag = 'internal scratch']
  %s0 = inlined_call_operand.vmem [shape: bf16[16,32], index: 0, kind: input, shape index: {}]
  %s1 = inlined_call_operand.vmem [shape: bf16[32,64], index: 1, kind: input, shape index: {}]
  %s2 = inlined_call_operand.vmem [shape: f32[1,64], index: 2, kind: input, shape index: {}]
  %s3 = inlined_call_operand.vmem [shape: bf16[64,32], index: 3, kind: input, shape index: {}]
  %s4 = inlined_call_operand.vmem [shape: f32[1,32], index: 4, kind: input, shape index: {}, may-alias: {4,6}]
  %s5 = inlined_call_operand.vmem [shape: f32[1,32], index: 5, kind: input, shape index: {}]
  %s6 = inlined_call_operand.vmem [shape: f32[1,32], index: 6, kind: input, shape index: {}, may-alias: {4,6}]
  %s7 = inlined_call_operand.vmem [shape: bf16[16,32], index: 7, kind: output, shape index: {}]
  %s8 = sld [smem:[#allocation0]]
  $region38: #{_lambda_.11} parent=0
    _
  %s10 = ssub.s32 1, %s8
  %s11 = scalar_select 0, %s10, %s8
  // Predicated region
  $region2: #{_lambda_.11} parent=0 // pred_check
    _
  $region3: #{_lambda_.11} parent=0 // pred_check_branch
    %13 = sbr.rel (0) target = $region5
  $region4: #{_lambda_.11} parent=0 // pred_region
    _
  $region5: #{_lambda_.11} parent=0 // pred_fallthru
    _
  // Predicated region
  $region6: #{_lambda_.11} parent=0 // pred_check
    _
  $region7: #{_lambda_.11} parent=0 // pred_check_branch
    %15 = sbr.rel (0) target = $region9
  $region8: #{_lambda_.11} parent=0 // pred_region
    _
  $region9: #{_lambda_.11} parent=0 // pred_fallthru
    _
  // Predicated region
  $region10: #{_lambda_.11} parent=0 // pred_check
    _
  $region11: #{_lambda_.11} parent=0 // pred_check_branch
    %17 = sbr.rel (0) target = $region13
  $region12: #{_lambda_.11} parent=0 // pred_region
    _
  $region13: #{_lambda_.11} parent=0 // pred_fallthru
    _
  // Predicated region
  $region14: #{_lambda_.11} parent=0 // pred_check
    _
  $region15: #{_lambda_.11} parent=0 // pred_check_branch
    %19 = sbr.rel (0) target = $region17
  $region16: #{_lambda_.11} parent=0 // pred_region
    _
  $region17: #{_lambda_.11} parent=0 // pred_fallthru
    _
  // Predicated region
  $region18: #{_lambda_.11} parent=0 // pred_check
    _
  $region19: #{_lambda_.11} parent=0 // pred_check_branch
    %21 = sbr.rel (0) target = $region21
  $region20: #{_lambda_.11} parent=0 // pred_region
    _
  $region21: #{_lambda_.11} parent=0 // pred_fallthru
    _
  // Predicated region
  $region22: #{_lambda_.11} parent=0 // pred_check
    _
  $region23: #{_lambda_.11} parent=0 // pred_check_branch
    %23 = sbr.rel (0) target = $region25
  $region24: #{_lambda_.11} parent=0 // pred_region
    _
  $region25: #{_lambda_.11} parent=0 // pred_fallthru
    _
  // Predicated region
  $region26: #{_lambda_.11} parent=0 // pred_check
    _
  $region27: #{_lambda_.11} parent=0 // pred_check_branch
    %25 = sbr.rel (0) target = $region29
  $region28: #{_lambda_.11} parent=0 // pred_region
    _
  $region29: #{_lambda_.11} parent=0 // pred_fallthru
    _
  %v27 = vld [vmem:[%s0] sm:$0xf]
  %v28 = vld [vmem:[%s0 + $0x4] sm:$0xf]
  %v29 = vld [vmem:[%s1] sm:$0xf]
  %v30 = vld [vmem:[%s1 + $0x4] sm:$0xf]
  %v31 = vld [vmem:[%s1 + $0x8] sm:$0xf]
  %v32 = vld [vmem:[%s1 + $0xc] sm:$0xf]
  %v33 = vld [vmem:[%s2] sm:$0x1]
  %v35 = vperm.slane %v33, 0
  %v39 = vunpack.c.l.b16 %v27
  %v40 = vunpack.c.l.b16 %v28
  %v41 = vpack.c.b16 %v40, %v39
  %v46 = vunpack.c.l.b16 %v29
  %v47 = vunpack.c.l.b16 %v30
  %v48 = vunpack.c.l.b16 %v31
  %v49 = vunpack.c.l.b16 %v32
  %v50 = vpack.c.b16 %v47, %v46
  %v51 = vpack.c.b16 %v49, %v48
  %vm54 = vcmask 261120
  %v56 = vsel %vm54, %v41, 0
  %58 = vmatpush.bf16.msra.mxu0 0
  %59 = vmatpush.bf16.msra.mxu0 0
  %60 = vmatpush.bf16.msra.mxu0 0
  %61 = vmatpush.bf16.msra.mxu0 0
  %62 = vmatpush.bf16.msra.mxu0 0
  %63 = vmatpush.bf16.msra.mxu0 0
  %64 = vmatpush.bf16.msra.mxu0 %v51
  %65 = vmatpush.bf16.msra.mxu0 %v50
  %66 = vmatmul.bf16.gmra.mxu0 %v56
  %v67 = vpop.f32.mrf.mxu0
  %v68 = vadd.f32 %v35, %v67
  %v69 = vpop.f32.mrf.mxu0
  %v70 = vadd.f32 %v35, %v69
  %71 = vdwg.mxu0
  %v72 = vmul.f32 %v68, %v68
  %v73 = vmul.f32 %v70, %v70
  %v74 = vmul.f32 %v68, %v72
  %v75 = vmul.f32 %v70, %v73
  %v76 = vmul.f32 %v74, 0.044715
  %v77 = vmul.f32 %v75, 0.044715
  %v78 = vadd.f32 %v68, %v76
  %v79 = vadd.f32 %v70, %v77
  %v80 = vmul.f32 %v78, 0.7978846
  %v81 = vmul.f32 %v79, 0.7978846
  %v82 = vtanh.pop %v80
  %v83 = vtanh.pop %v81
  %v84 = vadd.f32 %v82, 1.0
  %v85 = vadd.f32 %v83, 1.0
  %v86 = vmul.f32 %v84, 0.5
  %v87 = vmul.f32 %v85, 0.5
  %v88 = vmul.f32 %v68, %v86
  %v89 = vmul.f32 %v70, %v87
  %v90 = vpack.c.bf16 %v89, %v88
  %v91 = vld [vmem:[%s3] sm:$0xf]
  %v92 = vld [vmem:[%s3 + $0x4] sm:$0xf]
  %v93 = vld [vmem:[%s3 + $0x8] sm:$0xf]
  %v94 = vld [vmem:[%s3 + $0xc] sm:$0xf]
  %v95 = vld [vmem:[%s3 + $0x10] sm:$0xf]
  %v96 = vld [vmem:[%s3 + $0x14] sm:$0xf]
  %v97 = vld [vmem:[%s3 + $0x18] sm:$0xf]
  %v98 = vld [vmem:[%s3 + $0x1c] sm:$0xf]
  %v99 = vld [vmem:[%s4] sm:$0x1]
  %v101 = vperm.slane %v99, 0
  %v111 = vunpack.c.l.b16 %v91
  %v112 = vunpack.c.l.b16 %v92
  %v113 = vunpack.c.l.b16 %v93
  %v114 = vunpack.c.l.b16 %v94
  %v115 = vunpack.c.l.b16 %v95
  %v116 = vunpack.c.l.b16 %v96
  %v117 = vunpack.c.l.b16 %v97
  %v118 = vunpack.c.l.b16 %v98
  %v119 = vpack.c.b16 %v112, %v111
  %v120 = vpack.c.b16 %v114, %v113
  %v121 = vpack.c.b16 %v116, %v115
  %v122 = vpack.c.b16 %v118, %v117
  %vm127 = vcmask 523264
  %v129 = vsel %vm127, %v90, 0
  %131 = vmatpush.bf16.msra.mxu0 0
  %132 = vmatpush.bf16.msra.mxu0 0
  %133 = vmatpush.bf16.msra.mxu0 0
  %134 = vmatpush.bf16.msra.mxu0 0
  %135 = vmatpush.bf16.msra.mxu0 %v122
  %136 = vmatpush.bf16.msra.mxu0 %v121
  %137 = vmatpush.bf16.msra.mxu0 %v120
  %138 = vmatpush.bf16.msra.mxu0 %v119
  %139 = vmatmul.bf16.gmra.mxu0 %v129
  %v140 = vpop.f32.mrf.mxu0
  %v141 = vadd.f32 %v101, %v140
  %v142 = vpop.f32.mrf.mxu0
  %v143 = vadd.f32 %v101, %v142
  %144 = vdwg.mxu0
  %v145 = vunpack.c.l.bf16 %v27
  %v146 = vunpack.c.l.bf16 %v28
  %v147 = vadd.f32 %v141, %v145
  %v148 = vadd.f32 %v143, %v146
  %v149 = vsel %vm54, %v147, 0.0
  %150 = vadd.xlane.f32.xlu0 %v149
  %v151 = vpop.xlane.xlu0 %150
  %v152 = vsel %vm54, %v148, 0.0
  %153 = vadd.xlane.f32.xlu0 %v152
  %v154 = vpop.xlane.xlu0 %153
  %v155 = vrcp.pop 32.0
  %v156 = vmul.f32 32.0, %v155
  %v157 = vsub.f32 1.0, %v156
  %v158 = vmul.f32 %v155, %v157
  %v159 = vadd.f32 %v155, %v158
  %vm160 = vweird.f32 %v155
  %v161 = vsel %vm160, %v155, %v159
  %v162 = vmul.f32 %v151, %v161
  %v163 = vmul.f32 %v154, %v161
  %v164 = vsub.f32 %v147, %v162
  %v165 = vsub.f32 %v148, %v163
  %v166 = vmul.f32 %v164, %v164
  %v167 = vmul.f32 %v165, %v165
  %v168 = vsel %vm54, %v166, 0.0
  %169 = vadd.xlane.f32.xlu0 %v168
  %v170 = vpop.xlane.xlu0 %169
  %v171 = vsel %vm54, %v167, 0.0
  %172 = vadd.xlane.f32.xlu0 %v171
  %v173 = vpop.xlane.xlu0 %172
  %v174 = vmul.f32 %v170, %v161
  %v175 = vmul.f32 %v173, %v161
  %v176 = vadd.f32 %v174, 1e-12
  %v177 = vadd.f32 %v175, 1e-12
  %v178 = vrsqrt.pop %v176
  %v179 = vmul.f32 %v178, %v176
  %v180 = vmul.f32 %v179, %v178
  %v181 = vmul.f32 0.5, %v180
  %v182 = vsub.f32 1.5, %v181
  %v183 = vmul.f32 %v178, %v182
  %vm184 = vweird.f32 %v176
  %vm185 = vweird.f32 %v178
  %vm186 = vmor %vm184, %vm185
  %v187 = vsel %vm186, %v178, %v183
  %v188 = vrsqrt.pop %v177
  %v189 = vmul.f32 %v188, %v177
  %v190 = vmul.f32 %v189, %v188
  %v191 = vmul.f32 0.5, %v190
  %v192 = vsub.f32 1.5, %v191
  %v193 = vmul.f32 %v188, %v192
  %vm194 = vweird.f32 %v177
  %vm195 = vweird.f32 %v188
  %vm196 = vmor %vm194, %vm195
  %v197 = vsel %vm196, %v188, %v193
  %v198 = vmul.f32 %v164, %v187
  %v199 = vmul.f32 %v165, %v197
  %v200 = vld [vmem:[%s5] sm:$0x1]
  %v202 = vperm.slane %v200, 0
  %v204 = vmul.f32 %v198, %v202
  %v205 = vmul.f32 %v199, %v202
  %v206 = vld [vmem:[%s6] sm:$0x1]
  %v208 = vperm.slane %v206, 0
  %v210 = vadd.f32 %v204, %v208
  %v211 = vadd.f32 %v205, %v208
  %v212 = vpack.c.bf16 %v210, %v210
  %v213 = vpack.c.bf16 %v211, %v211
  %vm214 = vcmask 257024
  %215 = vst.msk [vmem:[%s7] sm:$0xf] %vm214, %v212
  %216 = vst.msk [vmem:[%s7 + $0x4] sm:$0xf] %vm214, %v213
  // Predicated region
  $region30: #{_lambda_.11} parent=0 // pred_check
    _
  $region31: #{_lambda_.11} parent=0 // pred_check_branch
    %218 = sbr.rel (0) target = $region33
  $region32: #{_lambda_.11} parent=0 // pred_region
    _
  $region33: #{_lambda_.11} parent=0 // pred_fallthru
    _
  // Predicated region
  $region34: #{_lambda_.11} parent=0 // pred_check
    _
  $region35: #{_lambda_.11} parent=0 // pred_check_branch
    %220 = sbr.rel (0) target = $region37
  $region36: #{_lambda_.11} parent=0 // pred_region
    _
  $region37: #{_lambda_.11} parent=0 // pred_fallthru
    _

// kernel: _lambda_.15
$region0: #{_lambda_.15}
  #allocation0 [shape = 'u32[]', space=smem, size = 0x4, offset = 0x4, fixed_abs, tag = 'smem constant byte address 0x4 - core index']
  #allocation1 [shape = 'u32[72,128]{1,0:T(1,128)}', space=vmem, size = 0x9000, scoped, tag = 'internal scratch']
  %s0 = inlined_call_operand.vmem [shape: bf16[2,32], index: 0, kind: input, shape index: {}]
  %s1 = inlined_call_operand.vmem [shape: bf16[32,32], index: 1, kind: input, shape index: {}]
  %s2 = inlined_call_operand.vmem [shape: f32[1,32], index: 2, kind: input, shape index: {}]
  %s3 = inlined_call_operand.vmem [shape: bf16[32,3], index: 3, kind: input, shape index: {}]
  %s4 = inlined_call_operand.vmem [shape: f32[1,3], index: 4, kind: input, shape index: {}]
  %s5 = inlined_call_operand.hbm [shape: f32[2,3], index: 5, kind: output, shape index: {}]
  %s6 = sld [smem:[#allocation0]]
  $region30: #{_lambda_.15} parent=0
    _
  %s8 = ssub.s32 1, %s6
  %s9 = scalar_select 0, %s8, %s6
  $region1: #{_lambda_.15} parent=0
    #allocation2 [shape = 'u8[1024]{0}', space=vmem, size = 0x400, scoped, tag = 'output window, operand 0, single buffered']
    #allocation3 [shape = 's32[1]{0}', space=sflag, size = 0x4, scoped, tag = 'scoped memory for _lambda_.15']
    %10 = vsyncpa [#allocation3], 0
    // Predicated region
    $region2: #{_lambda_.15} parent=1 // pred_check
      _
    $region3: #{_lambda_.15} parent=1 // pred_check_branch
      %12 = sbr.rel (0) target = $region5
    $region4: #{_lambda_.15} parent=1 // pred_region
      _
    $region5: #{_lambda_.15} parent=1 // pred_fallthru
      _
    // Predicated region
    $region6: #{_lambda_.15} parent=1 // pred_check
      _
    $region7: #{_lambda_.15} parent=1 // pred_check_branch
      %14 = sbr.rel (0) target = $region9
    $region8: #{_lambda_.15} parent=1 // pred_region
      _
    $region9: #{_lambda_.15} parent=1 // pred_fallthru
      _
    // Predicated region
    $region10: #{_lambda_.15} parent=1 // pred_check
      _
    $region11: #{_lambda_.15} parent=1 // pred_check_branch
      %16 = sbr.rel (0) target = $region13
    $region12: #{_lambda_.15} parent=1 // pred_region
      _
    $region13: #{_lambda_.15} parent=1 // pred_fallthru
      _
    // Predicated region
    $region14: #{_lambda_.15} parent=1 // pred_check
      _
    $region15: #{_lambda_.15} parent=1 // pred_check_branch
      %18 = sbr.rel (0) target = $region17
    $region16: #{_lambda_.15} parent=1 // pred_region
      _
    $region17: #{_lambda_.15} parent=1 // pred_fallthru
      _
    // Predicated region
    $region18: #{_lambda_.15} parent=1 // pred_check
      _
    $region19: #{_lambda_.15} parent=1 // pred_check_branch
      %20 = sbr.rel (0) target = $region21
    $region20: #{_lambda_.15} parent=1 // pred_region
      _
    $region21: #{_lambda_.15} parent=1 // pred_fallthru
      _
    %v22 = vld [vmem:[%s0] sm:$0x1]
    %v23 = vld [vmem:[%s1] sm:$0xf]
    %v24 = vld [vmem:[%s1 + $0x4] sm:$0xf]
    %v25 = vld [vmem:[%s1 + $0x8] sm:$0xf]
    %v26 = vld [vmem:[%s1 + $0xc] sm:$0xf]
    %v27 = vld [vmem:[%s2] sm:$0x1]
    %v29 = vperm.slane %v27, 0
    %v35 = vunpack.c.l.b16 %v23
    %v36 = vunpack.c.l.b16 %v24
    %v37 = vunpack.c.l.b16 %v25
    %v38 = vunpack.c.l.b16 %v26
    %v39 = vpack.c.b16 %v36, %v35
    %v40 = vpack.c.b16 %v38, %v37
    %vm43 = vcmask 261120
    %v45 = vsel %vm43, %v22, 0
    %47 = vmatpush.bf16.msra.mxu0 0
    %48 = vmatpush.bf16.msra.mxu0 0
    %49 = vmatpush.bf16.msra.mxu0 0
    %50 = vmatpush.bf16.msra.mxu0 0
    %51 = vmatpush.bf16.msra.mxu0 0
    %52 = vmatpush.bf16.msra.mxu0 0
    %53 = vmatpush.bf16.msra.mxu0 %v40
    %54 = vmatpush.bf16.msra.mxu0 %v39
    %55 = vmatmul.bf16.gmra.mxu0 %v45
    %v56 = vpop.f32.mrf.mxu0
    %v57 = vadd.f32 %v29, %v56
    %v58 = vpop.f32.mrf.mxu0
    %59 = vdwg.mxu0
    %v60 = vtanh.pop %v57
    %v61 = vpack.c.bf16 %v60, %v60
    %v62 = vld [vmem:[%s3] sm:$0xf]
    %v63 = vld [vmem:[%s3 + $0x4] sm:$0xf]
    %v64 = vld [vmem:[%s3 + $0x8] sm:$0xf]
    %v65 = vld [vmem:[%s3 + $0xc] sm:$0xf]
    %v66 = vld [vmem:[%s4] sm:$0x1]
    %v68 = vperm.slane %v66, 0
    %v74 = vunpack.c.l.b16 %v62
    %v75 = vunpack.c.l.b16 %v63
    %v76 = vunpack.c.l.b16 %v64
    %v77 = vunpack.c.l.b16 %v65
    %v78 = vpack.c.b16 %v75, %v74
    %v79 = vpack.c.b16 %v77, %v76
    %v83 = vsel %vm43, %v61, 0
    %85 = vmatpush.bf16.msra.mxu0 0
    %86 = vmatpush.bf16.msra.mxu0 0
    %87 = vmatpush.bf16.msra.mxu0 0
    %88 = vmatpush.bf16.msra.mxu0 0
    %89 = vmatpush.bf16.msra.mxu0 0
    %90 = vmatpush.bf16.msra.mxu0 0
    %91 = vmatpush.bf16.msra.mxu0 %v79
    %92 = vmatpush.bf16.msra.mxu0 %v78
    %93 = vmatmul.bf16.gmra.mxu0 %v83
    %v94 = vpop.f32.mrf.mxu0
    %v95 = vadd.f32 %v68, %v94
    %v96 = vpop.f32.mrf.mxu0
    %97 = vdwg.mxu0
    %vm98 = vcmask 17408
    %99 = vst.msk [vmem:[#allocation2] sm:$0x3] %vm98, %v95
    // Predicated region
    $region22: #{_lambda_.15} parent=1 // pred_check
      _
    $region23: #{_lambda_.15} parent=1 // pred_check_branch
      %101 = sbr.rel (0) target = $region25
    $region24: #{_lambda_.15} parent=1 // pred_region
      %103 = vsyncadd [#allocation3], 0
      %s105 = sshll.u32 [#allocation2], 4
      %s106 = int_to_ptr.vmem [resolvable:$true] %s105
      %s107 = sshll.u32 %s5, 4
      %s108 = int_to_ptr.hbm [resolvable:$true] %s107
      %110 = dma.vmem_to_hbm [thread:$0]  %s106, 32, %s108, [#allocation3]
    $region25: #{_lambda_.15} parent=1 // pred_fallthru
      _
    // Predicated region
    $region26: #{_lambda_.15} parent=1 // pred_check
      _
    $region27: #{_lambda_.15} parent=1 // pred_check_branch
      %112 = sbr.rel (0) target = $region29
    $region28: #{_lambda_.15} parent=1 // pred_region
      %114 = dma.done [#allocation3], 32
    $region29: #{_lambda_.15} parent=1 // pred_fallthru
      _
    %115 = vsyncpa [#allocation3], 1

</llo_original>
